<compile_context>
chip_gen: v7x
topology: tpu7x:2x2x1
jax: 0.10.0
libtpu: 0.0.40
codegen_flags: <defaults>
</compile_context>

<pallas_src>
import functools

import jax
import jax.numpy as jnp
from jax.experimental import pallas as pl
from jax.experimental.pallas import tpu as pltpu


def _gmodule_kernel(x_ref, w_ref, b_ref, o_ref, patches_ref, *,
                    row_stride, n_ch, tail):
    """One grid step: a chunk of samples, flattened padded spatial on lanes.

    x_ref      : (T, Lb)    zero-padded samples (Lb = chunk * SPAD), f32/bf16
    w_ref      : (T, 9*T)   conv weights with BN scale folded in
    b_ref      : (T, 1)     folded BN bias (includes conv bias)
    o_ref      : (T, Lb)
    patches_ref: (9*T, Lb)  VMEM im2col scratch
    """
    T = n_ch
    Lb = x_ref.shape[1]

    x = x_ref[...].astype(jnp.float32)
    # Zero tail so shifted windows never index past the block (shifts <= 2*row_stride+2).
    xext = jnp.concatenate([x, jnp.zeros((T, tail), jnp.float32)], axis=1)

    x_center = None
    # Static unroll over the 9 taps: each is a pure lane shift of the lane-dense
    # tile (no (H*W,T) relayout), written into the im2col scratch.
    for k in range(9):
        dh, dw = divmod(k, 3)
        s = dh * row_stride + dw
        shifted = xext[:, s:s + Lb]
        patches_ref[k * T:(k + 1) * T, :] = shifted
        if k == 4:                       # center tap == the residual input x itself
            x_center = shifted

    # Single MXU matmul: (T, 9T) x (9T, Lb) -> (T, Lb); output lane dim = Lb (>=128).
    y = jnp.dot(w_ref[...], patches_ref[...], preferred_element_type=jnp.float32)

    gate = jax.nn.sigmoid(y + b_ref[...])            # BN scale already folded into w
    o_ref[...] = (gate * x_center + x_center).astype(o_ref.dtype)


def gmodule_forward(x, conv_w, conv_b, bn_gamma, bn_beta, bn_mean, bn_var, eps=1e-5):
    """x: (b, t, c, h, w) float32. Returns same shape."""
    b, t, c, h, w = x.shape
    T, N, H, W = t, b * c, h, w
    HP, WP = H + 2, W + 2
    SP = HP * WP                                   # padded plane, flattened
    SPAD = ((SP + 127) // 128) * 128               # per-sample lane footprint (128-aligned)
    TAIL = 128                                     # >= max tap shift (2*WP + 2)

    n_chunks = 2 if N % 2 == 0 else 1              # >=2 parallel steps keeps both v7x TCs busy
    chunk = N // n_chunks
    Lb = chunk * SPAD

    # ---- layout prep: channel-major so T sits on sublanes, spatial on lanes ------
    # (b,t,c,h,w) -> (t,b,c,h,w) -> (T,N,H,W) -> zero-pad halo -> flatten+align lanes
    x_t = jnp.transpose(x, (1, 0, 2, 3, 4)).reshape(T, N, H, W)
    x_p = jnp.pad(x_t, ((0, 0), (0, 0), (1, 1), (1, 1)))            # (T, N, HP, WP)
    x_f = jnp.pad(x_p.reshape(T, N, SP), ((0, 0), (0, 0), (0, SPAD - SP)))
    x_f = x_f.reshape(T, N * SPAD)

    # ---- fold BN (eval mode) into the conv weights / bias ------------------------
    inv_std = 1.0 / jnp.sqrt(bn_var + eps)
    scale = bn_gamma * inv_std                                       # (T,)
    bias = (bn_beta + scale * (conv_b - bn_mean)).reshape(T, 1)
    # conv_w (T_out, T_in, 3, 3) -> (T_out, kh, kw, T_in) -> (T_out, 9*T_in); fold scale.
    w_mat = jnp.transpose(conv_w, (0, 2, 3, 1)).reshape(T, 9 * T) * scale[:, None]
    w_mat = w_mat.astype(jnp.float32)

    kernel = functools.partial(_gmodule_kernel, row_stride=WP, n_ch=T, tail=TAIL)

    out_f = pl.pallas_call(
        kernel,
        out_shape=jax.ShapeDtypeStruct((T, N * SPAD), x.dtype),
        grid_spec=pltpu.PrefetchScalarGridSpec(
            num_scalar_prefetch=0,
            grid=(n_chunks,),
            in_specs=[
                pl.BlockSpec((T, Lb), lambda i: (0, i)),          # samples chunk
                pl.BlockSpec((T, 9 * T), lambda i: (0, 0)),       # folded weights
                pl.BlockSpec((T, 1), lambda i: (0, 0)),           # folded bias
            ],
            out_specs=pl.BlockSpec((T, Lb), lambda i: (0, i)),
            scratch_shapes=[pltpu.VMEM((9 * T, Lb), jnp.float32)],
        ),
        compiler_params=pltpu.CompilerParams(
            dimension_semantics=("parallel",)),
    )(x_f, w_mat, bias)

    # ---- crop the valid region and restore (b, t, c, h, w) -----------------------
    out_p = out_f.reshape(T, N, SPAD)[:, :, :SP].reshape(T, N, HP, WP)[:, :, :H, :W]
    out = jnp.transpose(out_p.reshape(T, b, c, H, W), (1, 0, 2, 3, 4))
    return out


def reference_forward(x, conv_w, conv_b, bn_gamma, bn_beta, bn_mean, bn_var, eps=1e-5):
    """Pure-JAX reference (lax.conv) for correctness checking."""
    b, t, c, h, w = x.shape
    feat = jnp.transpose(x, (0, 2, 1, 3, 4)).reshape(b * c, t, h, w)  # NCHW
    conv = jax.lax.conv_general_dilated(
        feat, conv_w, window_strides=(1, 1), padding=((1, 1), (1, 1)),
        dimension_numbers=("NCHW", "OIHW", "NCHW"),
        precision=jax.lax.Precision.HIGHEST)
    conv = conv + conv_b.reshape(1, t, 1, 1)
    inv_std = 1.0 / jnp.sqrt(bn_var + eps)
    bn = (conv - bn_mean.reshape(1, t, 1, 1)) * (bn_gamma * inv_std).reshape(1, t, 1, 1) \
         + bn_beta.reshape(1, t, 1, 1)
    feat = bn.reshape(b, c, t, h, w).transpose(0, 2, 1, 3, 4)
    gate = jax.nn.sigmoid(feat)
    return gate * x + x


if __name__ == "__main__":
    key = jax.random.PRNGKey(0)
    k_x, k_w, k_b, k_g, k_be, k_m, k_v = jax.random.split(key, 7)

    # Small shapes: batch=2, time=8 (conv channels), channels=4, spatial=16
    b, t, c, h, w = 2, 8, 4, 16, 16

    x = jax.random.normal(k_x, (b, t, c, h, w), dtype=jnp.float32)
    conv_w = jax.random.normal(k_w, (t, t, 3, 3), dtype=jnp.float32) * 0.1
    conv_b = jax.random.normal(k_b, (t,), dtype=jnp.float32) * 0.1
    bn_gamma = 1.0 + 0.1 * jax.random.normal(k_g, (t,), dtype=jnp.float32)
    bn_beta = 0.1 * jax.random.normal(k_be, (t,), dtype=jnp.float32)
    bn_mean = 0.1 * jax.random.normal(k_m, (t,), dtype=jnp.float32)
    bn_var = jnp.abs(jax.random.normal(k_v, (t,), dtype=jnp.float32)) + 0.5

    out = gmodule_forward(x, conv_w, conv_b, bn_gamma, bn_beta, bn_mean, bn_var)
    out = jax.block_until_ready(out)

    ref = reference_forward(x, conv_w, conv_b, bn_gamma, bn_beta, bn_mean, bn_var)
    assert out.shape == (b, t, c, h, w)
    assert jnp.allclose(out, ref, atol=1e-4, rtol=1e-4), \
        f"max abs err {jnp.max(jnp.abs(out - ref))}"

    print("KERNEL_OK")
</pallas_src>

<mosaic_0001>
module attributes {stable_mosaic.version = 11 : i64} {
  func.func @_gmodule_kernel(%arg0: i32, %arg1: memref<8x1536xf32, #tpu.memory_space<vmem>>, %arg2: memref<8x72xf32, #tpu.memory_space<vmem>>, %arg3: memref<8x1xf32, #tpu.memory_space<vmem>>, %arg4: memref<8x1536xf32, #tpu.memory_space<vmem>>, %arg5: memref<72x1536xf32, #tpu.memory_space<vmem>>) attributes {dimension_semantics = [#tpu.dimension_semantics<parallel>], iteration_bounds = array<i64: 2>, scalar_prefetch = 0 : i64, scratch_operands = 1 : i64, tpu.core_type = #tpu.core_type<tc>, window_params = [{transform_indices = @transform_0, window_bounds = array<i64: 8, 1536>}, {pipeline_mode = #tpu.pipeline_mode<synchronous>, transform_indices = @transform_1, window_bounds = array<i64: 8, 72>}, {pipeline_mode = #tpu.pipeline_mode<synchronous>, transform_indices = @transform_2, window_bounds = array<i64: 8, 1>}, {transform_indices = @transform_3, window_bounds = array<i64: 8, 1536>}]} {
    %c0 = arith.constant 0 : index
    %c0_0 = arith.constant 0 : index
    %0 = vector.load %arg1[%c0, %c0_0] : memref<8x1536xf32, #tpu.memory_space<vmem>>, vector<8x1536xf32>
    %cst = arith.constant 0.000000e+00 : f32
    %1 = vector.broadcast %cst : f32 to vector<8x128xf32>
    %2 = tpu.concatenate %0, %1 in 1 : vector<8x1536xf32>, vector<8x128xf32> -> vector<8x1664xf32>
    %3 = vector.extract_strided_slice %2 {offsets = [0, 0], sizes = [8, 1536], strides = [1, 1]} : vector<8x1664xf32> to vector<8x1536xf32>
    %c0_1 = arith.constant 0 : index
    %c0_2 = arith.constant 0 : index
    %4 = vector.load %arg5[%c0_1, %c0_2] : memref<72x1536xf32, #tpu.memory_space<vmem>>, vector<8x1536xf32>
    tpu.vector_store %arg5[%c0_1, %c0_2], %3 {strides = array<i32>} : memref<72x1536xf32, #tpu.memory_space<vmem>>, vector<8x1536xf32>,
    %5 = vector.extract_strided_slice %2 {offsets = [0, 1], sizes = [8, 1536], strides = [1, 1]} : vector<8x1664xf32> to vector<8x1536xf32>
    %c8 = arith.constant 8 : index
    %c0_3 = arith.constant 0 : index
    %6 = vector.load %arg5[%c8, %c0_3] : memref<72x1536xf32, #tpu.memory_space<vmem>>, vector<8x1536xf32>
    tpu.vector_store %arg5[%c8, %c0_3], %5 {strides = array<i32>} : memref<72x1536xf32, #tpu.memory_space<vmem>>, vector<8x1536xf32>,
    %7 = vector.extract_strided_slice %2 {offsets = [0, 2], sizes = [8, 1536], strides = [1, 1]} : vector<8x1664xf32> to vector<8x1536xf32>
    %c16 = arith.constant 16 : index
    %c0_4 = arith.constant 0 : index
    %8 = vector.load %arg5[%c16, %c0_4] : memref<72x1536xf32, #tpu.memory_space<vmem>>, vector<8x1536xf32>
    tpu.vector_store %arg5[%c16, %c0_4], %7 {strides = array<i32>} : memref<72x1536xf32, #tpu.memory_space<vmem>>, vector<8x1536xf32>,
    %9 = vector.extract_strided_slice %2 {offsets = [0, 18], sizes = [8, 1536], strides = [1, 1]} : vector<8x1664xf32> to vector<8x1536xf32>
    %c24 = arith.constant 24 : index
    %c0_5 = arith.constant 0 : index
    %10 = vector.load %arg5[%c24, %c0_5] : memref<72x1536xf32, #tpu.memory_space<vmem>>, vector<8x1536xf32>
    tpu.vector_store %arg5[%c24, %c0_5], %9 {strides = array<i32>} : memref<72x1536xf32, #tpu.memory_space<vmem>>, vector<8x1536xf32>,
    %11 = vector.extract_strided_slice %2 {offsets = [0, 19], sizes = [8, 1536], strides = [1, 1]} : vector<8x1664xf32> to vector<8x1536xf32>
    %c32 = arith.constant 32 : index
    %c0_6 = arith.constant 0 : index
    %12 = vector.load %arg5[%c32, %c0_6] : memref<72x1536xf32, #tpu.memory_space<vmem>>, vector<8x1536xf32>
    tpu.vector_store %arg5[%c32, %c0_6], %11 {strides = array<i32>} : memref<72x1536xf32, #tpu.memory_space<vmem>>, vector<8x1536xf32>,
    %13 = vector.extract_strided_slice %2 {offsets = [0, 20], sizes = [8, 1536], strides = [1, 1]} : vector<8x1664xf32> to vector<8x1536xf32>
    %c40 = arith.constant 40 : index
    %c0_7 = arith.constant 0 : index
    %14 = vector.load %arg5[%c40, %c0_7] : memref<72x1536xf32, #tpu.memory_space<vmem>>, vector<8x1536xf32>
    tpu.vector_store %arg5[%c40, %c0_7], %13 {strides = array<i32>} : memref<72x1536xf32, #tpu.memory_space<vmem>>, vector<8x1536xf32>,
    %15 = vector.extract_strided_slice %2 {offsets = [0, 36], sizes = [8, 1536], strides = [1, 1]} : vector<8x1664xf32> to vector<8x1536xf32>
    %c48 = arith.constant 48 : index
    %c0_8 = arith.constant 0 : index
    %16 = vector.load %arg5[%c48, %c0_8] : memref<72x1536xf32, #tpu.memory_space<vmem>>, vector<8x1536xf32>
    tpu.vector_store %arg5[%c48, %c0_8], %15 {strides = array<i32>} : memref<72x1536xf32, #tpu.memory_space<vmem>>, vector<8x1536xf32>,
    %17 = vector.extract_strided_slice %2 {offsets = [0, 37], sizes = [8, 1536], strides = [1, 1]} : vector<8x1664xf32> to vector<8x1536xf32>
    %c56 = arith.constant 56 : index
    %c0_9 = arith.constant 0 : index
    %18 = vector.load %arg5[%c56, %c0_9] : memref<72x1536xf32, #tpu.memory_space<vmem>>, vector<8x1536xf32>
    tpu.vector_store %arg5[%c56, %c0_9], %17 {strides = array<i32>} : memref<72x1536xf32, #tpu.memory_space<vmem>>, vector<8x1536xf32>,
    %19 = vector.extract_strided_slice %2 {offsets = [0, 38], sizes = [8, 1536], strides = [1, 1]} : vector<8x1664xf32> to vector<8x1536xf32>
    %c64 = arith.constant 64 : index
    %c0_10 = arith.constant 0 : index
    %20 = vector.load %arg5[%c64, %c0_10] : memref<72x1536xf32, #tpu.memory_space<vmem>>, vector<8x1536xf32>
    tpu.vector_store %arg5[%c64, %c0_10], %19 {strides = array<i32>} : memref<72x1536xf32, #tpu.memory_space<vmem>>, vector<8x1536xf32>,
    %c0_11 = arith.constant 0 : index
    %c0_12 = arith.constant 0 : index
    %21 = vector.load %arg2[%c0_11, %c0_12] : memref<8x72xf32, #tpu.memory_space<vmem>>, vector<8x72xf32>
    %c0_13 = arith.constant 0 : index
    %c0_14 = arith.constant 0 : index
    %22 = vector.load %arg5[%c0_13, %c0_14] : memref<72x1536xf32, #tpu.memory_space<vmem>>, vector<72x1536xf32>
    %cst_15 = arith.constant dense<0.000000e+00> : vector<8x1536xf32>
    %23 = tpu.matmul %21, %22, %cst_15 {dimension_numbers = #tpu.dot_dimension_numbers<[1], [0], [0], [1], [0, 0, 1, 1], [], []>} : vector<8x72xf32>, vector<72x1536xf32>, vector<8x1536xf32> -> vector<8x1536xf32>
    %c0_16 = arith.constant 0 : index
    %c0_17 = arith.constant 0 : index
    %24 = vector.load %arg3[%c0_16, %c0_17] : memref<8x1xf32, #tpu.memory_space<vmem>>, vector<8x1xf32>
    %25 = vector.broadcast %24 : vector<8x1xf32> to vector<8x1536xf32>
    %26 = arith.addf %23, %25 : vector<8x1536xf32>
    %27 = arith.negf %26 : vector<8x1536xf32>
    %28 = math.exp %27 : vector<8x1536xf32>
    %cst_18 = arith.constant 1.000000e+00 : f32
    %29 = vector.broadcast %cst_18 : f32 to vector<8x1536xf32>
    %30 = arith.addf %29, %28 : vector<8x1536xf32>
    %31 = arith.divf %29, %30 : vector<8x1536xf32>
    %32 = arith.mulf %31, %11 : vector<8x1536xf32>
    %33 = arith.addf %32, %11 : vector<8x1536xf32>
    %c0_19 = arith.constant 0 : index
    %c0_20 = arith.constant 0 : index
    %34 = vector.load %arg4[%c0_19, %c0_20] : memref<8x1536xf32, #tpu.memory_space<vmem>>, vector<8x1536xf32>
    tpu.vector_store %arg4[%c0_19, %c0_20], %33 {strides = array<i32>} : memref<8x1536xf32, #tpu.memory_space<vmem>>, vector<8x1536xf32>,
    return
  }
  func.func @transform_0(%arg0: i32) -> (i32, i32) {
    %c0_i32 = arith.constant 0 : i32
    %c0_i32_0 = arith.constant 0 : i32
    return %c0_i32, %arg0 : i32, i32
  }
  func.func @transform_1(%arg0: i32) -> (i32, i32) {
    %c0_i32 = arith.constant 0 : i32
    %c0_i32_0 = arith.constant 0 : i32
    %c0_i32_1 = arith.constant 0 : i32
    return %c0_i32, %c0_i32_0 : i32, i32
  }
  func.func @transform_2(%arg0: i32) -> (i32, i32) {
    %c0_i32 = arith.constant 0 : i32
    %c0_i32_0 = arith.constant 0 : i32
    %c0_i32_1 = arith.constant 0 : i32
    return %c0_i32, %c0_i32_0 : i32, i32
  }
  func.func @transform_3(%arg0: i32) -> (i32, i32) {
    %c0_i32 = arith.constant 0 : i32
    %c0_i32_0 = arith.constant 0 : i32
    return %c0_i32, %arg0 : i32, i32
  }
}

</mosaic_0001>

<llo_original>
// kernel: tpu_custom_call.1
$region0: #{tpu_custom_call.1}
  #allocation0 [shape = 'u32[]', space=smem, size = 0x4, offset = 0x4, fixed_abs, tag = 'smem constant byte address 0x4 - core index']
  #allocation1 [shape = 'u32[144,128]{1,0:T(1,128)}', space=vmem, size = 0x12000, scoped, tag = 'internal scratch']
  #allocation2 [shape = 'f32[72,1536]{1,0:T(8,128)}', space=vmem, size = 0x6c000, scoped, tag = 'scratch operand']
  %s0 = inlined_call_operand.hbm [shape: f32[8,3072], index: 0, kind: input, shape index: {}]
  %s1 = inlined_call_operand.vmem [shape: f32[8,72], index: 1, kind: input, shape index: {}]
  %s2 = inlined_call_operand.vmem [shape: f32[8,1], index: 2, kind: input, shape index: {}]
  %s3 = inlined_call_operand.hbm [shape: f32[8,3072], index: 3, kind: output, shape index: {}]
  %s4 = sld [smem:[#allocation0]]
  $region49: #{tpu_custom_call.1} parent=0
    _
  %s6 = ssub.s32 1, %s4
  %s7 = scalar_select 0, %s6, %s4
  $region1: #{tpu_custom_call.1} parent=0
    #allocation3 [shape = 'u8[98304]{0}', space=vmem, size = 0x18000, scoped, tag = 'input window, operand 0']
    #allocation4 [shape = 's32[2]{0}', space=sflag, size = 0x8, scoped, tag = 'scoped memory for tpu_custom_call.1']
    #allocation5 [shape = 's32[2]{0}', space=sflag, size = 0x8, scoped, tag = 'scoped memory for tpu_custom_call.1']
    #allocation6 [shape = 'u8[98304]{0}', space=vmem, size = 0x18000, scoped, tag = 'output window, operand 0']
    %8 = vsyncpa [#allocation4], 0
    %s9 = scalar_lea.sflag [#allocation4], 1
    %10 = vsyncpa %s9, 0
    %11 = vsyncpa [#allocation5], 0
    %s12 = scalar_lea.sflag [#allocation5], 1
    %13 = vsyncpa %s12, 0
    loop: start=0, step=1, limit=4
    $region2: #{tpu_custom_call.1} parent=1 // loop_pre_header
      _
    $region3: #{tpu_custom_call.1} parent=1 // loop_header
      %s15 = sphi 0, %s19
      %p16 = scmp.ge.s32.totalorder %s15, 4
      %s25 = sphi 0, %s27
      %s28 = sphi 0, %s25
      %s29 = sphi 0, %s28
      %s45 = sphi 0, %s29
      %s49 = sphi 0, %s49
      %s51 = sphi 0, %s49
      %s52 = sphi 0, %s51
      %s66 = sphi 0, %s52
      %s70 = sphi 0, %s70
      %s72 = sphi 0, %s70
      %s73 = sphi 0, %s72
      %s87 = sphi 0, %s73
      %s93 = sphi 0, %s95
      %s96 = sphi 0, %s93
      %s97 = sphi 0, %s96
      %s113 = sphi 0, %s97
    $region4: #{tpu_custom_call.1} parent=1 // loop_header_branch
      %18 = sbr.rel (%p16) target = $region8
    $region5: #{tpu_custom_call.1} parent=1 // loop_body
      %s20 = ssub.s32 %s15, 1
      %s21 = ssub.s32 %s15, 2
      %s22 = sadd.s32 %s15, 1
      %s23 = ssub.s32 %s15, %s22
      %p24 = scmp.eq.s32.totalorder %s23, 0
      %s26 = sadd.s32 %s25, 1
      %s27 = scalar_select %p24, %s25, %s26
      %p30 = pneg %p24
      %p31 = scmp.eq.s32.totalorder %s15, 1
      %p32 = por %p30, %p31
      %p33 = scmp.ne.s32.totalorder %s25, %s28
      %p34 = scmp.eq.s32.totalorder %s15, 0
      %p35 = por %p33, %p34
      %p36 = scmp.ne.s32.totalorder %s25, %s28
      %p37 = scmp.eq.s32.totalorder %s20, 1
      %p38 = por %p36, %p37
      %p39 = scmp.ne.s32.totalorder %s28, %s29
      %p40 = scmp.eq.s32.totalorder %s20, 0
      %p41 = por %p39, %p40
      %p42 = scmp.ne.s32.totalorder %s28, %s29
      %p43 = scmp.eq.s32.totalorder %s21, 1
      %p44 = por %p42, %p43
      %p46 = scmp.ne.s32.totalorder %s29, %s45
      %p47 = scmp.eq.s32.totalorder %s21, 0
      %p48 = por %p46, %p47
      %s50 = sadd.s32 %s49, 1
      %p53 = scmp.eq.s32.totalorder %s15, 1
      %p54 = scmp.ne.s32.totalorder %s49, %s51
      %p55 = scmp.eq.s32.totalorder %s15, 0
      %p56 = por %p54, %p55
      %p57 = scmp.ne.s32.totalorder %s49, %s51
      %p58 = scmp.eq.s32.totalorder %s20, 1
      %p59 = por %p57, %p58
      %p60 = scmp.ne.s32.totalorder %s51, %s52
      %p61 = scmp.eq.s32.totalorder %s20, 0
      %p62 = por %p60, %p61
      %p63 = scmp.ne.s32.totalorder %s51, %s52
      %p64 = scmp.eq.s32.totalorder %s21, 1
      %p65 = por %p63, %p64
      %p67 = scmp.ne.s32.totalorder %s52, %s66
      %p68 = scmp.eq.s32.totalorder %s21, 0
      %p69 = por %p67, %p68
      %s71 = sadd.s32 %s70, 1
      %p74 = scmp.eq.s32.totalorder %s15, 1
      %p75 = scmp.ne.s32.totalorder %s70, %s72
      %p76 = scmp.eq.s32.totalorder %s15, 0
      %p77 = por %p75, %p76
      %p78 = scmp.ne.s32.totalorder %s70, %s72
      %p79 = scmp.eq.s32.totalorder %s20, 1
      %p80 = por %p78, %p79
      %p81 = scmp.ne.s32.totalorder %s72, %s73
      %p82 = scmp.eq.s32.totalorder %s20, 0
      %p83 = por %p81, %p82
      %p84 = scmp.ne.s32.totalorder %s72, %s73
      %p85 = scmp.eq.s32.totalorder %s21, 1
      %p86 = por %p84, %p85
      %p88 = scmp.ne.s32.totalorder %s73, %s87
      %p89 = scmp.eq.s32.totalorder %s21, 0
      %p90 = por %p88, %p89
      %s91 = ssub.s32 %s15, %s22
      %p92 = scmp.eq.s32.totalorder %s91, 0
      %s94 = sadd.s32 %s93, 1
      %s95 = scalar_select %p92, %s93, %s94
      %p98 = pneg %p92
      %p99 = scmp.eq.s32.totalorder %s15, 1
      %p100 = por %p98, %p99
      %p101 = scmp.ne.s32.totalorder %s93, %s96
      %p102 = scmp.eq.s32.totalorder %s15, 0
      %p103 = por %p101, %p102
      %p104 = scmp.ne.s32.totalorder %s93, %s96
      %p105 = scmp.eq.s32.totalorder %s20, 1
      %p106 = por %p104, %p105
      %p107 = scmp.ne.s32.totalorder %s96, %s97
      %p108 = scmp.eq.s32.totalorder %s20, 0
      %p109 = por %p107, %p108
      %p110 = scmp.ne.s32.totalorder %s96, %s97
      %p111 = scmp.eq.s32.totalorder %s21, 1
      %p112 = por %p110, %p111
      %p114 = scmp.ne.s32.totalorder %s97, %s113
      %p115 = scmp.eq.s32.totalorder %s21, 0
      %p116 = por %p114, %p115
      %p117 = scmp.le.s32.totalorder 1, %s15
      %p118 = scmp.lt.s32.totalorder %s15, 3
      %p119 = pnand %p117, %p118
      %p120 = pneg %p119
      // Predicated region
      $region9: #{tpu_custom_call.1} parent=5 // pred_check
        _
      $region10: #{tpu_custom_call.1} parent=5 // pred_check_branch
        %122 = sbr.rel (%p119) target = $region12
      $region11: #{tpu_custom_call.1} parent=5 // pred_region
        %s123 = ssub.s32 %s15, 1
        // Predicated region
        $region13: #{tpu_custom_call.1} parent=11 // pred_check
          %p124 = pneg %p62
        $region14: #{tpu_custom_call.1} parent=11 // pred_check_branch
          %126 = sbr.rel (%p124) target = $region16
        $region15: #{tpu_custom_call.1} parent=11 // pred_region
          _
        $region16: #{tpu_custom_call.1} parent=11 // pred_fallthru
          _
        // Predicated region
        $region17: #{tpu_custom_call.1} parent=11 // pred_check
          %p127 = pneg %p83
        $region18: #{tpu_custom_call.1} parent=11 // pred_check_branch
          %129 = sbr.rel (%p127) target = $region20
        $region19: #{tpu_custom_call.1} parent=11 // pred_region
          _
        $region20: #{tpu_custom_call.1} parent=11 // pred_fallthru
          _
      $region12: #{tpu_custom_call.1} parent=5 // pred_fallthru
        _
      %p130 = scmp.lt.s32.totalorder %s15, 2
      // Predicated region
      $region21: #{tpu_custom_call.1} parent=5 // pred_check
        %p131 = pneg %p130
      $region22: #{tpu_custom_call.1} parent=5 // pred_check_branch
        %133 = sbr.rel (%p131) target = $region24
      $region23: #{tpu_custom_call.1} parent=5 // pred_region
        // Predicated region
        $region25: #{tpu_custom_call.1} parent=23 // pred_check
          %p134 = pneg %p35
        $region26: #{tpu_custom_call.1} parent=23 // pred_check_branch
          %136 = sbr.rel (%p134) target = $region28
        $region27: #{tpu_custom_call.1} parent=23 // pred_region
          %s137 = sand.u32 %s25, 1
          %s138 = scalar_lea.sflag [#allocation4], %s137
          %s139 = sand.u32 %s25, 1
          %s140 = smul.addr %s139, 96
          %s141 = scalar_lea.vmem [#allocation3], %s140
          %s142 = smul.u32 12, %s15
          %s144 = ssub.s32 1536, 1536
          %145 = vsyncadd %s138, %s144
          %s146 = smul.addr %s142, 128
          %s147 = scalar_lea.hbm %s0, %s146
          %s149 = sshll.u32 %s141, 4
          %s150 = int_to_ptr.vmem [resolvable:$true] %s149
          %152 = dma.hbm_to_vmem [thread:$0]  %s147, 1536, %s150, %s138
        $region28: #{tpu_custom_call.1} parent=23 // pred_fallthru
          _
      $region24: #{tpu_custom_call.1} parent=5 // pred_fallthru
        _
      %p153 = scmp.le.s32.totalorder 1, %s15
      %p154 = scmp.lt.s32.totalorder %s15, 3
      %p155 = pnand %p153, %p154
      %p156 = pneg %p155
      // Predicated region
      $region29: #{tpu_custom_call.1} parent=5 // pred_check
        _
      $region30: #{tpu_custom_call.1} parent=5 // pred_check_branch
        %158 = sbr.rel (%p155) target = $region32
      $region31: #{tpu_custom_call.1} parent=5 // pred_region
        %s159 = ssub.s32 %s15, 1
        %s160 = sand.u32 %s28, 1
        %s161 = scalar_lea.sflag [#allocation4], %s160
        %s162 = sand.u32 %s28, 1
        %s163 = smul.addr %s162, 96
        %s164 = scalar_lea.vmem [#allocation3], %s163
        // Predicated region
        $region33: #{tpu_custom_call.1} parent=31 // pred_check
          %p165 = pneg %p41
        $region34: #{tpu_custom_call.1} parent=31 // pred_check_branch
          %167 = sbr.rel (%p165) target = $region36
        $region35: #{tpu_custom_call.1} parent=31 // pred_region
          %168 = dma.done %s161, 1536
        $region36: #{tpu_custom_call.1} parent=31 // pred_fallthru
          _
        %s169 = sand.u32 %s28, 1
        %s170 = scalar_lea.sflag [#allocation4], %s169
        %s171 = sand.u32 %s28, 1
        %s172 = smul.addr %s171, 96
        %s173 = scalar_lea.vmem [#allocation3], %s172
        %p174 = pneg %p41
        %p175 = pneg %p38
        %p176 = pneg %p62
        %p177 = pneg %p59
        %p178 = pneg %p83
        %p179 = pneg %p80
        %p180 = pneg %p109
        %p181 = pneg %p106
        %s182 = sand.u32 %s96, 1
        %s183 = scalar_lea.sflag [#allocation5], %s182
        %s184 = sand.u32 %s96, 1
        %s185 = smul.addr %s184, 96
        %s186 = scalar_lea.vmem [#allocation6], %s185
        %s187 = smul.u32 12, %s20
        %s188 = smul.u32 12, %s20
        %v189 = vld [vmem:[%s164] sm:$0xff]
        %v190 = vld [vmem:[%s164 + $0x8] sm:$0xff]
        %v191 = vld [vmem:[%s164 + $0x10] sm:$0xff]
        %v192 = vld [vmem:[%s164 + $0x18] sm:$0xff]
        %v193 = vld [vmem:[%s164 + $0x20] sm:$0xff]
        %v194 = vld [vmem:[%s164 + $0x28] sm:$0xff]
        %v195 = vld [vmem:[%s164 + $0x30] sm:$0xff]
        %v196 = vld [vmem:[%s164 + $0x38] sm:$0xff]
        %v197 = vld [vmem:[%s164 + $0x40] sm:$0xff]
        %v198 = vld [vmem:[%s164 + $0x48] sm:$0xff]
        %v199 = vld [vmem:[%s164 + $0x50] sm:$0xff]
        %v200 = vld [vmem:[%s164 + $0x58] sm:$0xff]
        %201 = vst [vmem:[#allocation2] sm:$0xff] %v189
        %202 = vst [vmem:[#allocation2 + $0x8] sm:$0xff] %v190
        %203 = vst [vmem:[#allocation2 + $0x10] sm:$0xff] %v191
        %204 = vst [vmem:[#allocation2 + $0x18] sm:$0xff] %v192
        %205 = vst [vmem:[#allocation2 + $0x20] sm:$0xff] %v193
        %206 = vst [vmem:[#allocation2 + $0x28] sm:$0xff] %v194
        %207 = vst [vmem:[#allocation2 + $0x30] sm:$0xff] %v195
        %208 = vst [vmem:[#allocation2 + $0x38] sm:$0xff] %v196
        %209 = vst [vmem:[#allocation2 + $0x40] sm:$0xff] %v197
        %210 = vst [vmem:[#allocation2 + $0x48] sm:$0xff] %v198
        %211 = vst [vmem:[#allocation2 + $0x50] sm:$0xff] %v199
        %212 = vst [vmem:[#allocation2 + $0x58] sm:$0xff] %v200
        %226 = vrot.lane.b32.xlu0 %v189, 127
        %v227 = vpop.permute.xlu0 %226
        %228 = vrot.lane.b32.xlu0 %v190, 127
        %v229 = vpop.permute.xlu0 %228
        %230 = vrot.lane.b32.xlu0 %v191, 127
        %v231 = vpop.permute.xlu0 %230
        %232 = vrot.lane.b32.xlu0 %v192, 127
        %v233 = vpop.permute.xlu0 %232
        %234 = vrot.lane.b32.xlu0 %v193, 127
        %v235 = vpop.permute.xlu0 %234
        %236 = vrot.lane.b32.xlu0 %v194, 127
        %v237 = vpop.permute.xlu0 %236
        %238 = vrot.lane.b32.xlu0 %v195, 127
        %v239 = vpop.permute.xlu0 %238
        %240 = vrot.lane.b32.xlu0 %v196, 127
        %v241 = vpop.permute.xlu0 %240
        %242 = vrot.lane.b32.xlu0 %v197, 127
        %v243 = vpop.permute.xlu0 %242
        %244 = vrot.lane.b32.xlu0 %v198, 127
        %v245 = vpop.permute.xlu0 %244
        %246 = vrot.lane.b32.xlu0 %v199, 127
        %v247 = vpop.permute.xlu0 %246
        %248 = vrot.lane.b32.xlu0 %v200, 127
        %v249 = vpop.permute.xlu0 %248
        %250 = vrot.lane.b32.xlu0 0.0, 127
        %v251 = vpop.permute.xlu0 %250
        %vm252 = vcmask 1039360
        %v253 = vsel %vm252, %v227, %v229
        %v254 = vsel %vm252, %v229, %v231
        %v255 = vsel %vm252, %v231, %v233
        %v256 = vsel %vm252, %v233, %v235
        %v257 = vsel %vm252, %v235, %v237
        %v258 = vsel %vm252, %v237, %v239
        %v259 = vsel %vm252, %v239, %v241
        %v260 = vsel %vm252, %v241, %v243
        %v261 = vsel %vm252, %v243, %v245
        %v262 = vsel %vm252, %v245, %v247
        %v263 = vsel %vm252, %v247, %v249
        %v264 = vsel %vm252, %v249, %v251
        %277 = vst [vmem:[#allocation2 + $0x60] sm:$0xff] %v253
        %278 = vst [vmem:[#allocation2 + $0x68] sm:$0xff] %v254
        %279 = vst [vmem:[#allocation2 + $0x70] sm:$0xff] %v255
        %280 = vst [vmem:[#allocation2 + $0x78] sm:$0xff] %v256
        %281 = vst [vmem:[#allocation2 + $0x80] sm:$0xff] %v257
        %282 = vst [vmem:[#allocation2 + $0x88] sm:$0xff] %v258
        %283 = vst [vmem:[#allocation2 + $0x90] sm:$0xff] %v259
        %284 = vst [vmem:[#allocation2 + $0x98] sm:$0xff] %v260
        %285 = vst [vmem:[#allocation2 + $0xa0] sm:$0xff] %v261
        %286 = vst [vmem:[#allocation2 + $0xa8] sm:$0xff] %v262
        %287 = vst [vmem:[#allocation2 + $0xb0] sm:$0xff] %v263
        %288 = vst [vmem:[#allocation2 + $0xb8] sm:$0xff] %v264
        %289 = vrot.lane.b32.xlu0 %v189, 126
        %v290 = vpop.permute.xlu0 %289
        %291 = vrot.lane.b32.xlu0 %v190, 126
        %v292 = vpop.permute.xlu0 %291
        %293 = vrot.lane.b32.xlu0 %v191, 126
        %v294 = vpop.permute.xlu0 %293
        %295 = vrot.lane.b32.xlu0 %v192, 126
        %v296 = vpop.permute.xlu0 %295
        %297 = vrot.lane.b32.xlu0 %v193, 126
        %v298 = vpop.permute.xlu0 %297
        %299 = vrot.lane.b32.xlu0 %v194, 126
        %v300 = vpop.permute.xlu0 %299
        %301 = vrot.lane.b32.xlu0 %v195, 126
        %v302 = vpop.permute.xlu0 %301
        %303 = vrot.lane.b32.xlu0 %v196, 126
        %v304 = vpop.permute.xlu0 %303
        %305 = vrot.lane.b32.xlu0 %v197, 126
        %v306 = vpop.permute.xlu0 %305
        %307 = vrot.lane.b32.xlu0 %v198, 126
        %v308 = vpop.permute.xlu0 %307
        %309 = vrot.lane.b32.xlu0 %v199, 126
        %v310 = vpop.permute.xlu0 %309
        %311 = vrot.lane.b32.xlu0 %v200, 126
        %v312 = vpop.permute.xlu0 %311
        %313 = vrot.lane.b32.xlu0 0.0, 126
        %v314 = vpop.permute.xlu0 %313
        %vm315 = vcmask 1031168
        %v316 = vsel %vm315, %v290, %v292
        %v317 = vsel %vm315, %v292, %v294
        %v318 = vsel %vm315, %v294, %v296
        %v319 = vsel %vm315, %v296, %v298
        %v320 = vsel %vm315, %v298, %v300
        %v321 = vsel %vm315, %v300, %v302
        %v322 = vsel %vm315, %v302, %v304
        %v323 = vsel %vm315, %v304, %v306
        %v324 = vsel %vm315, %v306, %v308
        %v325 = vsel %vm315, %v308, %v310
        %v326 = vsel %vm315, %v310, %v312
        %v327 = vsel %vm315, %v312, %v314
        %340 = vst [vmem:[#allocation2 + $0xc0] sm:$0xff] %v316
        %341 = vst [vmem:[#allocation2 + $0xc8] sm:$0xff] %v317
        %342 = vst [vmem:[#allocation2 + $0xd0] sm:$0xff] %v318
        %343 = vst [vmem:[#allocation2 + $0xd8] sm:$0xff] %v319
        %344 = vst [vmem:[#allocation2 + $0xe0] sm:$0xff] %v320
        %345 = vst [vmem:[#allocation2 + $0xe8] sm:$0xff] %v321
        %346 = vst [vmem:[#allocation2 + $0xf0] sm:$0xff] %v322
        %347 = vst [vmem:[#allocation2 + $0xf8] sm:$0xff] %v323
        %348 = vst [vmem:[#allocation2 + $0x100] sm:$0xff] %v324
        %349 = vst [vmem:[#allocation2 + $0x108] sm:$0xff] %v325
        %350 = vst [vmem:[#allocation2 + $0x110] sm:$0xff] %v326
        %351 = vst [vmem:[#allocation2 + $0x118] sm:$0xff] %v327
        %352 = vrot.lane.b32.xlu0 %v189, 110
        %v353 = vpop.permute.xlu0 %352
        %354 = vrot.lane.b32.xlu0 %v190, 110
        %v355 = vpop.permute.xlu0 %354
        %356 = vrot.lane.b32.xlu0 %v191, 110
        %v357 = vpop.permute.xlu0 %356
        %358 = vrot.lane.b32.xlu0 %v192, 110
        %v359 = vpop.permute.xlu0 %358
        %360 = vrot.lane.b32.xlu0 %v193, 110
        %v361 = vpop.permute.xlu0 %360
        %362 = vrot.lane.b32.xlu0 %v194, 110
        %v363 = vpop.permute.xlu0 %362
        %364 = vrot.lane.b32.xlu0 %v195, 110
        %v365 = vpop.permute.xlu0 %364
        %366 = vrot.lane.b32.xlu0 %v196, 110
        %v367 = vpop.permute.xlu0 %366
        %368 = vrot.lane.b32.xlu0 %v197, 110
        %v369 = vpop.permute.xlu0 %368
        %370 = vrot.lane.b32.xlu0 %v198, 110
        %v371 = vpop.permute.xlu0 %370
        %372 = vrot.lane.b32.xlu0 %v199, 110
        %v373 = vpop.permute.xlu0 %372
        %374 = vrot.lane.b32.xlu0 %v200, 110
        %v375 = vpop.permute.xlu0 %374
        %376 = vrot.lane.b32.xlu0 0.0, 110
        %v377 = vpop.permute.xlu0 %376
        %vm378 = vcmask 900096
        %v379 = vsel %vm378, %v353, %v355
        %v380 = vsel %vm378, %v355, %v357
        %v381 = vsel %vm378, %v357, %v359
        %v382 = vsel %vm378, %v359, %v361
        %v383 = vsel %vm378, %v361, %v363
        %v384 = vsel %vm378, %v363, %v365
        %v385 = vsel %vm378, %v365, %v367
        %v386 = vsel %vm378, %v367, %v369
        %v387 = vsel %vm378, %v369, %v371
        %v388 = vsel %vm378, %v371, %v373
        %v389 = vsel %vm378, %v373, %v375
        %v390 = vsel %vm378, %v375, %v377
        %403 = vst [vmem:[#allocation2 + $0x120] sm:$0xff] %v379
        %404 = vst [vmem:[#allocation2 + $0x128] sm:$0xff] %v380
        %405 = vst [vmem:[#allocation2 + $0x130] sm:$0xff] %v381
        %406 = vst [vmem:[#allocation2 + $0x138] sm:$0xff] %v382
        %407 = vst [vmem:[#allocation2 + $0x140] sm:$0xff] %v383
        %408 = vst [vmem:[#allocation2 + $0x148] sm:$0xff] %v384
        %409 = vst [vmem:[#allocation2 + $0x150] sm:$0xff] %v385
        %410 = vst [vmem:[#allocation2 + $0x158] sm:$0xff] %v386
        %411 = vst [vmem:[#allocation2 + $0x160] sm:$0xff] %v387
        %412 = vst [vmem:[#allocation2 + $0x168] sm:$0xff] %v388
        %413 = vst [vmem:[#allocation2 + $0x170] sm:$0xff] %v389
        %414 = vst [vmem:[#allocation2 + $0x178] sm:$0xff] %v390
        %415 = vrot.lane.b32.xlu0 %v189, 109
        %v416 = vpop.permute.xlu0 %415
        %417 = vrot.lane.b32.xlu0 %v190, 109
        %v418 = vpop.permute.xlu0 %417
        %419 = vrot.lane.b32.xlu0 %v191, 109
        %v420 = vpop.permute.xlu0 %419
        %421 = vrot.lane.b32.xlu0 %v192, 109
        %v422 = vpop.permute.xlu0 %421
        %423 = vrot.lane.b32.xlu0 %v193, 109
        %v424 = vpop.permute.xlu0 %423
        %425 = vrot.lane.b32.xlu0 %v194, 109
        %v426 = vpop.permute.xlu0 %425
        %427 = vrot.lane.b32.xlu0 %v195, 109
        %v428 = vpop.permute.xlu0 %427
        %429 = vrot.lane.b32.xlu0 %v196, 109
        %v430 = vpop.permute.xlu0 %429
        %431 = vrot.lane.b32.xlu0 %v197, 109
        %v432 = vpop.permute.xlu0 %431
        %433 = vrot.lane.b32.xlu0 %v198, 109
        %v434 = vpop.permute.xlu0 %433
        %435 = vrot.lane.b32.xlu0 %v199, 109
        %v436 = vpop.permute.xlu0 %435
        %437 = vrot.lane.b32.xlu0 %v200, 109
        %v438 = vpop.permute.xlu0 %437
        %439 = vrot.lane.b32.xlu0 0.0, 109
        %v440 = vpop.permute.xlu0 %439
        %vm441 = vcmask 891904
        %v442 = vsel %vm441, %v416, %v418
        %v443 = vsel %vm441, %v418, %v420
        %v444 = vsel %vm441, %v420, %v422
        %v445 = vsel %vm441, %v422, %v424
        %v446 = vsel %vm441, %v424, %v426
        %v447 = vsel %vm441, %v426, %v428
        %v448 = vsel %vm441, %v428, %v430
        %v449 = vsel %vm441, %v430, %v432
        %v450 = vsel %vm441, %v432, %v434
        %v451 = vsel %vm441, %v434, %v436
        %v452 = vsel %vm441, %v436, %v438
        %v453 = vsel %vm441, %v438, %v440
        %466 = vst [vmem:[#allocation2 + $0x180] sm:$0xff] %v442
        %467 = vst [vmem:[#allocation2 + $0x188] sm:$0xff] %v443
        %468 = vst [vmem:[#allocation2 + $0x190] sm:$0xff] %v444
        %469 = vst [vmem:[#allocation2 + $0x198] sm:$0xff] %v445
        %470 = vst [vmem:[#allocation2 + $0x1a0] sm:$0xff] %v446
        %471 = vst [vmem:[#allocation2 + $0x1a8] sm:$0xff] %v447
        %472 = vst [vmem:[#allocation2 + $0x1b0] sm:$0xff] %v448
        %473 = vst [vmem:[#allocation2 + $0x1b8] sm:$0xff] %v449
        %474 = vst [vmem:[#allocation2 + $0x1c0] sm:$0xff] %v450
        %475 = vst [vmem:[#allocation2 + $0x1c8] sm:$0xff] %v451
        %476 = vst [vmem:[#allocation2 + $0x1d0] sm:$0xff] %v452
        %477 = vst [vmem:[#allocation2 + $0x1d8] sm:$0xff] %v453
        %478 = vrot.lane.b32.xlu0 %v189, 108
        %v479 = vpop.permute.xlu0 %478
        %480 = vrot.lane.b32.xlu0 %v190, 108
        %v481 = vpop.permute.xlu0 %480
        %482 = vrot.lane.b32.xlu0 %v191, 108
        %v483 = vpop.permute.xlu0 %482
        %484 = vrot.lane.b32.xlu0 %v192, 108
        %v485 = vpop.permute.xlu0 %484
        %486 = vrot.lane.b32.xlu0 %v193, 108
        %v487 = vpop.permute.xlu0 %486
        %488 = vrot.lane.b32.xlu0 %v194, 108
        %v489 = vpop.permute.xlu0 %488
        %490 = vrot.lane.b32.xlu0 %v195, 108
        %v491 = vpop.permute.xlu0 %490
        %492 = vrot.lane.b32.xlu0 %v196, 108
        %v493 = vpop.permute.xlu0 %492
        %494 = vrot.lane.b32.xlu0 %v197, 108
        %v495 = vpop.permute.xlu0 %494
        %496 = vrot.lane.b32.xlu0 %v198, 108
        %v497 = vpop.permute.xlu0 %496
        %498 = vrot.lane.b32.xlu0 %v199, 108
        %v499 = vpop.permute.xlu0 %498
        %500 = vrot.lane.b32.xlu0 %v200, 108
        %v501 = vpop.permute.xlu0 %500
        %502 = vrot.lane.b32.xlu0 0.0, 108
        %v503 = vpop.permute.xlu0 %502
        %vm504 = vcmask 883712
        %v505 = vsel %vm504, %v479, %v481
        %v506 = vsel %vm504, %v481, %v483
        %v507 = vsel %vm504, %v483, %v485
        %v508 = vsel %vm504, %v485, %v487
        %v509 = vsel %vm504, %v487, %v489
        %v510 = vsel %vm504, %v489, %v491
        %v511 = vsel %vm504, %v491, %v493
        %v512 = vsel %vm504, %v493, %v495
        %v513 = vsel %vm504, %v495, %v497
        %v514 = vsel %vm504, %v497, %v499
        %v515 = vsel %vm504, %v499, %v501
        %v516 = vsel %vm504, %v501, %v503
        %529 = vst [vmem:[#allocation2 + $0x1e0] sm:$0xff] %v505
        %530 = vst [vmem:[#allocation2 + $0x1e8] sm:$0xff] %v506
        %531 = vst [vmem:[#allocation2 + $0x1f0] sm:$0xff] %v507
        %532 = vst [vmem:[#allocation2 + $0x1f8] sm:$0xff] %v508
        %533 = vst [vmem:[#allocation2 + $0x200] sm:$0xff] %v509
        %534 = vst [vmem:[#allocation2 + $0x208] sm:$0xff] %v510
        %535 = vst [vmem:[#allocation2 + $0x210] sm:$0xff] %v511
        %536 = vst [vmem:[#allocation2 + $0x218] sm:$0xff] %v512
        %537 = vst [vmem:[#allocation2 + $0x220] sm:$0xff] %v513
        %538 = vst [vmem:[#allocation2 + $0x228] sm:$0xff] %v514
        %539 = vst [vmem:[#allocation2 + $0x230] sm:$0xff] %v515
        %540 = vst [vmem:[#allocation2 + $0x238] sm:$0xff] %v516
        %541 = vrot.lane.b32.xlu0 %v189, 92
        %v542 = vpop.permute.xlu0 %541
        %543 = vrot.lane.b32.xlu0 %v190, 92
        %v544 = vpop.permute.xlu0 %543
        %545 = vrot.lane.b32.xlu0 %v191, 92
        %v546 = vpop.permute.xlu0 %545
        %547 = vrot.lane.b32.xlu0 %v192, 92
        %v548 = vpop.permute.xlu0 %547
        %549 = vrot.lane.b32.xlu0 %v193, 92
        %v550 = vpop.permute.xlu0 %549
        %551 = vrot.lane.b32.xlu0 %v194, 92
        %v552 = vpop.permute.xlu0 %551
        %553 = vrot.lane.b32.xlu0 %v195, 92
        %v554 = vpop.permute.xlu0 %553
        %555 = vrot.lane.b32.xlu0 %v196, 92
        %v556 = vpop.permute.xlu0 %555
        %557 = vrot.lane.b32.xlu0 %v197, 92
        %v558 = vpop.permute.xlu0 %557
        %559 = vrot.lane.b32.xlu0 %v198, 92
        %v560 = vpop.permute.xlu0 %559
        %561 = vrot.lane.b32.xlu0 %v199, 92
        %v562 = vpop.permute.xlu0 %561
        %563 = vrot.lane.b32.xlu0 %v200, 92
        %v564 = vpop.permute.xlu0 %563
        %565 = vrot.lane.b32.xlu0 0.0, 92
        %v566 = vpop.permute.xlu0 %565
        %vm567 = vcmask 752640
        %v568 = vsel %vm567, %v542, %v544
        %v569 = vsel %vm567, %v544, %v546
        %v570 = vsel %vm567, %v546, %v548
        %v571 = vsel %vm567, %v548, %v550
        %v572 = vsel %vm567, %v550, %v552
        %v573 = vsel %vm567, %v552, %v554
        %v574 = vsel %vm567, %v554, %v556
        %v575 = vsel %vm567, %v556, %v558
        %v576 = vsel %vm567, %v558, %v560
        %v577 = vsel %vm567, %v560, %v562
        %v578 = vsel %vm567, %v562, %v564
        %v579 = vsel %vm567, %v564, %v566
        %592 = vst [vmem:[#allocation2 + $0x240] sm:$0xff] %v568
        %593 = vst [vmem:[#allocation2 + $0x248] sm:$0xff] %v569
        %594 = vst [vmem:[#allocation2 + $0x250] sm:$0xff] %v570
        %595 = vst [vmem:[#allocation2 + $0x258] sm:$0xff] %v571
        %596 = vst [vmem:[#allocation2 + $0x260] sm:$0xff] %v572
        %597 = vst [vmem:[#allocation2 + $0x268] sm:$0xff] %v573
        %598 = vst [vmem:[#allocation2 + $0x270] sm:$0xff] %v574
        %599 = vst [vmem:[#allocation2 + $0x278] sm:$0xff] %v575
        %600 = vst [vmem:[#allocation2 + $0x280] sm:$0xff] %v576
        %601 = vst [vmem:[#allocation2 + $0x288] sm:$0xff] %v577
        %602 = vst [vmem:[#allocation2 + $0x290] sm:$0xff] %v578
        %603 = vst [vmem:[#allocation2 + $0x298] sm:$0xff] %v579
        %604 = vrot.lane.b32.xlu0 %v189, 91
        %v605 = vpop.permute.xlu0 %604
        %606 = vrot.lane.b32.xlu0 %v190, 91
        %v607 = vpop.permute.xlu0 %606
        %608 = vrot.lane.b32.xlu0 %v191, 91
        %v609 = vpop.permute.xlu0 %608
        %610 = vrot.lane.b32.xlu0 %v192, 91
        %v611 = vpop.permute.xlu0 %610
        %612 = vrot.lane.b32.xlu0 %v193, 91
        %v613 = vpop.permute.xlu0 %612
        %614 = vrot.lane.b32.xlu0 %v194, 91
        %v615 = vpop.permute.xlu0 %614
        %616 = vrot.lane.b32.xlu0 %v195, 91
        %v617 = vpop.permute.xlu0 %616
        %618 = vrot.lane.b32.xlu0 %v196, 91
        %v619 = vpop.permute.xlu0 %618
        %620 = vrot.lane.b32.xlu0 %v197, 91
        %v621 = vpop.permute.xlu0 %620
        %622 = vrot.lane.b32.xlu0 %v198, 91
        %v623 = vpop.permute.xlu0 %622
        %624 = vrot.lane.b32.xlu0 %v199, 91
        %v625 = vpop.permute.xlu0 %624
        %626 = vrot.lane.b32.xlu0 %v200, 91
        %v627 = vpop.permute.xlu0 %626
        %628 = vrot.lane.b32.xlu0 0.0, 91
        %v629 = vpop.permute.xlu0 %628
        %vm630 = vcmask 744448
        %v631 = vsel %vm630, %v605, %v607
        %v632 = vsel %vm630, %v607, %v609
        %v633 = vsel %vm630, %v609, %v611
        %v634 = vsel %vm630, %v611, %v613
        %v635 = vsel %vm630, %v613, %v615
        %v636 = vsel %vm630, %v615, %v617
        %v637 = vsel %vm630, %v617, %v619
        %v638 = vsel %vm630, %v619, %v621
        %v639 = vsel %vm630, %v621, %v623
        %v640 = vsel %vm630, %v623, %v625
        %v641 = vsel %vm630, %v625, %v627
        %v642 = vsel %vm630, %v627, %v629
        %655 = vst [vmem:[#allocation2 + $0x2a0] sm:$0xff] %v631
        %656 = vst [vmem:[#allocation2 + $0x2a8] sm:$0xff] %v632
        %657 = vst [vmem:[#allocation2 + $0x2b0] sm:$0xff] %v633
        %658 = vst [vmem:[#allocation2 + $0x2b8] sm:$0xff] %v634
        %659 = vst [vmem:[#allocation2 + $0x2c0] sm:$0xff] %v635
        %660 = vst [vmem:[#allocation2 + $0x2c8] sm:$0xff] %v636
        %661 = vst [vmem:[#allocation2 + $0x2d0] sm:$0xff] %v637
        %662 = vst [vmem:[#allocation2 + $0x2d8] sm:$0xff] %v638
        %663 = vst [vmem:[#allocation2 + $0x2e0] sm:$0xff] %v639
        %664 = vst [vmem:[#allocation2 + $0x2e8] sm:$0xff] %v640
        %665 = vst [vmem:[#allocation2 + $0x2f0] sm:$0xff] %v641
        %666 = vst [vmem:[#allocation2 + $0x2f8] sm:$0xff] %v642
        %667 = vrot.lane.b32.xlu0 %v189, 90
        %v668 = vpop.permute.xlu0 %667
        %669 = vrot.lane.b32.xlu0 %v190, 90
        %v670 = vpop.permute.xlu0 %669
        %671 = vrot.lane.b32.xlu0 %v191, 90
        %v672 = vpop.permute.xlu0 %671
        %673 = vrot.lane.b32.xlu0 %v192, 90
        %v674 = vpop.permute.xlu0 %673
        %675 = vrot.lane.b32.xlu0 %v193, 90
        %v676 = vpop.permute.xlu0 %675
        %677 = vrot.lane.b32.xlu0 %v194, 90
        %v678 = vpop.permute.xlu0 %677
        %679 = vrot.lane.b32.xlu0 %v195, 90
        %v680 = vpop.permute.xlu0 %679
        %681 = vrot.lane.b32.xlu0 %v196, 90
        %v682 = vpop.permute.xlu0 %681
        %683 = vrot.lane.b32.xlu0 %v197, 90
        %v684 = vpop.permute.xlu0 %683
        %685 = vrot.lane.b32.xlu0 %v198, 90
        %v686 = vpop.permute.xlu0 %685
        %687 = vrot.lane.b32.xlu0 %v199, 90
        %v688 = vpop.permute.xlu0 %687
        %689 = vrot.lane.b32.xlu0 %v200, 90
        %v690 = vpop.permute.xlu0 %689
        %691 = vrot.lane.b32.xlu0 0.0, 90
        %v692 = vpop.permute.xlu0 %691
        %vm693 = vcmask 736256
        %v694 = vsel %vm693, %v668, %v670
        %v695 = vsel %vm693, %v670, %v672
        %v696 = vsel %vm693, %v672, %v674
        %v697 = vsel %vm693, %v674, %v676
        %v698 = vsel %vm693, %v676, %v678
        %v699 = vsel %vm693, %v678, %v680
        %v700 = vsel %vm693, %v680, %v682
        %v701 = vsel %vm693, %v682, %v684
        %v702 = vsel %vm693, %v684, %v686
        %v703 = vsel %vm693, %v686, %v688
        %v704 = vsel %vm693, %v688, %v690
        %v705 = vsel %vm693, %v690, %v692
        %718 = vst [vmem:[#allocation2 + $0x300] sm:$0xff] %v694
        %719 = vst [vmem:[#allocation2 + $0x308] sm:$0xff] %v695
        %720 = vst [vmem:[#allocation2 + $0x310] sm:$0xff] %v696
        %721 = vst [vmem:[#allocation2 + $0x318] sm:$0xff] %v697
        %722 = vst [vmem:[#allocation2 + $0x320] sm:$0xff] %v698
        %723 = vst [vmem:[#allocation2 + $0x328] sm:$0xff] %v699
        %724 = vst [vmem:[#allocation2 + $0x330] sm:$0xff] %v700
        %725 = vst [vmem:[#allocation2 + $0x338] sm:$0xff] %v701
        %726 = vst [vmem:[#allocation2 + $0x340] sm:$0xff] %v702
        %727 = vst [vmem:[#allocation2 + $0x348] sm:$0xff] %v703
        %728 = vst [vmem:[#allocation2 + $0x350] sm:$0xff] %v704
        %729 = vst [vmem:[#allocation2 + $0x358] sm:$0xff] %v705
        %v730 = vld [vmem:[%s1] sm:$0xff]
        %v731 = vld [vmem:[#allocation2] sm:$0xff]
        %v732 = vld [vmem:[#allocation2 + $0x8] sm:$0xff]
        %v733 = vld [vmem:[#allocation2 + $0x10] sm:$0xff]
        %v734 = vld [vmem:[#allocation2 + $0x18] sm:$0xff]
        %v735 = vld [vmem:[#allocation2 + $0x20] sm:$0xff]
        %v736 = vld [vmem:[#allocation2 + $0x28] sm:$0xff]
        %v737 = vld [vmem:[#allocation2 + $0x30] sm:$0xff]
        %v738 = vld [vmem:[#allocation2 + $0x38] sm:$0xff]
        %v739 = vld [vmem:[#allocation2 + $0x40] sm:$0xff]
        %v740 = vld [vmem:[#allocation2 + $0x48] sm:$0xff]
        %v741 = vld [vmem:[#allocation2 + $0x50] sm:$0xff]
        %v742 = vld [vmem:[#allocation2 + $0x58] sm:$0xff]
        %v743 = vld [vmem:[#allocation2 + $0x60] sm:$0xff]
        %v744 = vld [vmem:[#allocation2 + $0x68] sm:$0xff]
        %v745 = vld [vmem:[#allocation2 + $0x70] sm:$0xff]
        %v746 = vld [vmem:[#allocation2 + $0x78] sm:$0xff]
        %v747 = vld [vmem:[#allocation2 + $0x80] sm:$0xff]
        %v748 = vld [vmem:[#allocation2 + $0x88] sm:$0xff]
        %v749 = vld [vmem:[#allocation2 + $0x90] sm:$0xff]
        %v750 = vld [vmem:[#allocation2 + $0x98] sm:$0xff]
        %v751 = vld [vmem:[#allocation2 + $0xa0] sm:$0xff]
        %v752 = vld [vmem:[#allocation2 + $0xa8] sm:$0xff]
        %v753 = vld [vmem:[#allocation2 + $0xb0] sm:$0xff]
        %v754 = vld [vmem:[#allocation2 + $0xb8] sm:$0xff]
        %v755 = vld [vmem:[#allocation2 + $0xc0] sm:$0xff]
        %v756 = vld [vmem:[#allocation2 + $0xc8] sm:$0xff]
        %v757 = vld [vmem:[#allocation2 + $0xd0] sm:$0xff]
        %v758 = vld [vmem:[#allocation2 + $0xd8] sm:$0xff]
        %v759 = vld [vmem:[#allocation2 + $0xe0] sm:$0xff]
        %v760 = vld [vmem:[#allocation2 + $0xe8] sm:$0xff]
        %v761 = vld [vmem:[#allocation2 + $0xf0] sm:$0xff]
        %v762 = vld [vmem:[#allocation2 + $0xf8] sm:$0xff]
        %v763 = vld [vmem:[#allocation2 + $0x100] sm:$0xff]
        %v764 = vld [vmem:[#allocation2 + $0x108] sm:$0xff]
        %v765 = vld [vmem:[#allocation2 + $0x110] sm:$0xff]
        %v766 = vld [vmem:[#allocation2 + $0x118] sm:$0xff]
        %v767 = vld [vmem:[#allocation2 + $0x120] sm:$0xff]
        %v768 = vld [vmem:[#allocation2 + $0x128] sm:$0xff]
        %v769 = vld [vmem:[#allocation2 + $0x130] sm:$0xff]
        %v770 = vld [vmem:[#allocation2 + $0x138] sm:$0xff]
        %v771 = vld [vmem:[#allocation2 + $0x140] sm:$0xff]
        %v772 = vld [vmem:[#allocation2 + $0x148] sm:$0xff]
        %v773 = vld [vmem:[#allocation2 + $0x150] sm:$0xff]
        %v774 = vld [vmem:[#allocation2 + $0x158] sm:$0xff]
        %v775 = vld [vmem:[#allocation2 + $0x160] sm:$0xff]
        %v776 = vld [vmem:[#allocation2 + $0x168] sm:$0xff]
        %v777 = vld [vmem:[#allocation2 + $0x170] sm:$0xff]
        %v778 = vld [vmem:[#allocation2 + $0x178] sm:$0xff]
        %v779 = vld [vmem:[#allocation2 + $0x180] sm:$0xff]
        %v780 = vld [vmem:[#allocation2 + $0x188] sm:$0xff]
        %v781 = vld [vmem:[#allocation2 + $0x190] sm:$0xff]
        %v782 = vld [vmem:[#allocation2 + $0x198] sm:$0xff]
        %v783 = vld [vmem:[#allocation2 + $0x1a0] sm:$0xff]
        %v784 = vld [vmem:[#allocation2 + $0x1a8] sm:$0xff]
        %v785 = vld [vmem:[#allocation2 + $0x1b0] sm:$0xff]
        %v786 = vld [vmem:[#allocation2 + $0x1b8] sm:$0xff]
        %v787 = vld [vmem:[#allocation2 + $0x1c0] sm:$0xff]
        %v788 = vld [vmem:[#allocation2 + $0x1c8] sm:$0xff]
        %v789 = vld [vmem:[#allocation2 + $0x1d0] sm:$0xff]
        %v790 = vld [vmem:[#allocation2 + $0x1d8] sm:$0xff]
        %v791 = vld [vmem:[#allocation2 + $0x1e0] sm:$0xff]
        %v792 = vld [vmem:[#allocation2 + $0x1e8] sm:$0xff]
        %v793 = vld [vmem:[#allocation2 + $0x1f0] sm:$0xff]
        %v794 = vld [vmem:[#allocation2 + $0x1f8] sm:$0xff]
        %v795 = vld [vmem:[#allocation2 + $0x200] sm:$0xff]
        %v796 = vld [vmem:[#allocation2 + $0x208] sm:$0xff]
        %v797 = vld [vmem:[#allocation2 + $0x210] sm:$0xff]
        %v798 = vld [vmem:[#allocation2 + $0x218] sm:$0xff]
        %v799 = vld [vmem:[#allocation2 + $0x220] sm:$0xff]
        %v800 = vld [vmem:[#allocation2 + $0x228] sm:$0xff]
        %v801 = vld [vmem:[#allocation2 + $0x230] sm:$0xff]
        %v802 = vld [vmem:[#allocation2 + $0x238] sm:$0xff]
        %v803 = vld [vmem:[#allocation2 + $0x240] sm:$0xff]
        %v804 = vld [vmem:[#allocation2 + $0x248] sm:$0xff]
        %v805 = vld [vmem:[#allocation2 + $0x250] sm:$0xff]
        %v806 = vld [vmem:[#allocation2 + $0x258] sm:$0xff]
        %v807 = vld [vmem:[#allocation2 + $0x260] sm:$0xff]
        %v808 = vld [vmem:[#allocation2 + $0x268] sm:$0xff]
        %v809 = vld [vmem:[#allocation2 + $0x270] sm:$0xff]
        %v810 = vld [vmem:[#allocation2 + $0x278] sm:$0xff]
        %v811 = vld [vmem:[#allocation2 + $0x280] sm:$0xff]
        %v812 = vld [vmem:[#allocation2 + $0x288] sm:$0xff]
        %v813 = vld [vmem:[#allocation2 + $0x290] sm:$0xff]
        %v814 = vld [vmem:[#allocation2 + $0x298] sm:$0xff]
        %v815 = vld [vmem:[#allocation2 + $0x2a0] sm:$0xff]
        %v816 = vld [vmem:[#allocation2 + $0x2a8] sm:$0xff]
        %v817 = vld [vmem:[#allocation2 + $0x2b0] sm:$0xff]
        %v818 = vld [vmem:[#allocation2 + $0x2b8] sm:$0xff]
        %v819 = vld [vmem:[#allocation2 + $0x2c0] sm:$0xff]
        %v820 = vld [vmem:[#allocation2 + $0x2c8] sm:$0xff]
        %v821 = vld [vmem:[#allocation2 + $0x2d0] sm:$0xff]
        %v822 = vld [vmem:[#allocation2 + $0x2d8] sm:$0xff]
        %v823 = vld [vmem:[#allocation2 + $0x2e0] sm:$0xff]
        %v824 = vld [vmem:[#allocation2 + $0x2e8] sm:$0xff]
        %v825 = vld [vmem:[#allocation2 + $0x2f0] sm:$0xff]
        %v826 = vld [vmem:[#allocation2 + $0x2f8] sm:$0xff]
        %v827 = vld [vmem:[#allocation2 + $0x300] sm:$0xff]
        %v828 = vld [vmem:[#allocation2 + $0x308] sm:$0xff]
        %v829 = vld [vmem:[#allocation2 + $0x310] sm:$0xff]
        %v830 = vld [vmem:[#allocation2 + $0x318] sm:$0xff]
        %v831 = vld [vmem:[#allocation2 + $0x320] sm:$0xff]
        %v832 = vld [vmem:[#allocation2 + $0x328] sm:$0xff]
        %v833 = vld [vmem:[#allocation2 + $0x330] sm:$0xff]
        %v834 = vld [vmem:[#allocation2 + $0x338] sm:$0xff]
        %v835 = vld [vmem:[#allocation2 + $0x340] sm:$0xff]
        %v836 = vld [vmem:[#allocation2 + $0x348] sm:$0xff]
        %v837 = vld [vmem:[#allocation2 + $0x350] sm:$0xff]
        %v838 = vld [vmem:[#allocation2 + $0x358] sm:$0xff]
        %v839 = vld [vmem:[%s2] sm:$0xff]
        %841 = vset.pattern.permute.xlu0 0
        %842 = vperm.xlu0 %841, %v839
        %v843 = vpop.permute.xlu0 %842
        %vm845 = vcmask 588800
        %v847 = vsel %vm845, %v730, 0
        %849 = vmatprep.subr.mxu0 %v732
        %850 = vmatpush1.msra.mxu0 %v731
        %851 = vmatprep.subr.mxu0 %v744
        %852 = vmatpush1.msra.mxu0 %v743
        %853 = vmatprep.subr.mxu0 %v756
        %854 = vmatpush1.msra.mxu0 %v755
        %855 = vmatprep.subr.mxu0 %v768
        %856 = vmatpush1.msra.mxu0 %v767
        %857 = vmatprep.subr.mxu0 %v780
        %858 = vmatpush1.msra.mxu0 %v779
        %859 = vmatprep.subr.mxu0 %v792
        %860 = vmatpush1.msra.mxu0 %v791
        %861 = vmatprep.subr.mxu0 %v804
        %862 = vmatpush1.msra.mxu0 %v803
        %863 = vmatprep.subr.mxu0 %v816
        %864 = vmatpush1.msra.mxu0 %v815
        %865 = vmatprep.subr.mxu0 %v828
        %866 = vmatpush1.msra.mxu0 %v827
        %867 = vmatprep.subr.mxu0 0.0
        %868 = vmatpush1.msra.mxu0 0.0
        %869 = vmatprep.subr.mxu0 0.0
        %870 = vmatpush1.msra.mxu0 0.0
        %871 = vmatprep.subr.mxu0 0.0
        %872 = vmatpush1.msra.mxu0 0.0
        %873 = vmatprep.subr.mxu0 0.0
        %874 = vmatpush1.msra.mxu0 0.0
        %875 = vmatprep.subr.mxu0 0.0
        %876 = vmatpush1.msra.mxu0 0.0
        %877 = vmatprep.subr.mxu0 0.0
        %878 = vmatpush1.msra.mxu0 0.0
        %879 = vmatprep.subr.mxu0 0.0
        %880 = vmatpush1.msra.mxu0 0.0
        %881 = vmatprep.subr.mxu0 0.0
        %882 = vmatpush1.msra.mxu0 0.0
        %883 = vmatprep.subr.mxu0 0.0
        %884 = vmatpush1.msra.mxu0 0.0
        %885 = vmatprep.subr.mxu0 0.0
        %886 = vmatpush1.msra.mxu0 0.0
        %887 = vmatprep.subr.mxu0 0.0
        %888 = vmatpush1.msra.mxu0 0.0
        %889 = vmatprep.subr.mxu0 0.0
        %890 = vmatpush1.msra.mxu0 0.0
        %891 = vmatprep.subr.mxu0 0.0
        %892 = vmatpush1.msra.mxu0 0.0
        %893 = vmatprep.subr.mxu0 0.0
        %894 = vmatpush1.msra.mxu0 0.0
        %895 = vmatprep.subr.mxu0 0.0
        %896 = vmatpush1.msra.mxu0 0.0
        %897 = vmatprep.subr.mxu0 0.0
        %898 = vmatpush1.msra.mxu0 0.0
        %899 = vmatprep.subr.mxu0 0.0
        %900 = vmatpush1.msra.mxu0 0.0
        %901 = vmatprep.subr.mxu0 0.0
        %902 = vmatpush1.msra.mxu0 0.0
        %903 = vmatprep.subr.mxu0 0.0
        %904 = vmatpush1.msra.mxu0 0.0
        %905 = vmatprep.subr.mxu0 0.0
        %906 = vmatpush1.msra.mxu0 0.0
        %907 = vmatprep.subr.mxu0 0.0
        %908 = vmatpush1.msra.mxu0 0.0
        %909 = vmatprep.subr.mxu0 0.0
        %910 = vmatpush1.msra.mxu0 0.0
        %911 = vmatprep.subr.mxu0 0.0
        %912 = vmatpush1.msra.mxu0 0.0
        %913 = vmatprep.mubr.f32.mxu0 0.0
        %914 = vmatmul.mubr.f32.gmra.mrb[0].mxu0 %v847
        %v915 = vpop.f32.mrb[0].mxu0
        %v916 = vadd.f32 %v843, %v915
        %v917 = vpop.f32.mrb[0].mxu0
        %v918 = vadd.f32 %v843, %v917
        %919 = vdwg.mxu0
        %920 = vmatprep.subr.mxu0 %v734
        %921 = vmatpush1.msra.mxu0 %v733
        %922 = vmatprep.subr.mxu0 %v746
        %923 = vmatpush1.msra.mxu0 %v745
        %924 = vmatprep.subr.mxu0 %v758
        %925 = vmatpush1.msra.mxu0 %v757
        %926 = vmatprep.subr.mxu0 %v770
        %927 = vmatpush1.msra.mxu0 %v769
        %928 = vmatprep.subr.mxu0 %v782
        %929 = vmatpush1.msra.mxu0 %v781
        %930 = vmatprep.subr.mxu0 %v794
        %931 = vmatpush1.msra.mxu0 %v793
        %932 = vmatprep.subr.mxu0 %v806
        %933 = vmatpush1.msra.mxu0 %v805
        %934 = vmatprep.subr.mxu0 %v818
        %935 = vmatpush1.msra.mxu0 %v817
        %936 = vmatprep.subr.mxu0 %v830
        %937 = vmatpush1.msra.mxu0 %v829
        %938 = vmatprep.subr.mxu0 0.0
        %939 = vmatpush1.msra.mxu0 0.0
        %940 = vmatprep.subr.mxu0 0.0
        %941 = vmatpush1.msra.mxu0 0.0
        %942 = vmatprep.subr.mxu0 0.0
        %943 = vmatpush1.msra.mxu0 0.0
        %944 = vmatprep.subr.mxu0 0.0
        %945 = vmatpush1.msra.mxu0 0.0
        %946 = vmatprep.subr.mxu0 0.0
        %947 = vmatpush1.msra.mxu0 0.0
        %948 = vmatprep.subr.mxu0 0.0
        %949 = vmatpush1.msra.mxu0 0.0
        %950 = vmatprep.subr.mxu0 0.0
        %951 = vmatpush1.msra.mxu0 0.0
        %952 = vmatprep.subr.mxu0 0.0
        %953 = vmatpush1.msra.mxu0 0.0
        %954 = vmatprep.subr.mxu0 0.0
        %955 = vmatpush1.msra.mxu0 0.0
        %956 = vmatprep.subr.mxu0 0.0
        %957 = vmatpush1.msra.mxu0 0.0
        %958 = vmatprep.subr.mxu0 0.0
        %959 = vmatpush1.msra.mxu0 0.0
        %960 = vmatprep.subr.mxu0 0.0
        %961 = vmatpush1.msra.mxu0 0.0
        %962 = vmatprep.subr.mxu0 0.0
        %963 = vmatpush1.msra.mxu0 0.0
        %964 = vmatprep.subr.mxu0 0.0
        %965 = vmatpush1.msra.mxu0 0.0
        %966 = vmatprep.subr.mxu0 0.0
        %967 = vmatpush1.msra.mxu0 0.0
        %968 = vmatprep.subr.mxu0 0.0
        %969 = vmatpush1.msra.mxu0 0.0
        %970 = vmatprep.subr.mxu0 0.0
        %971 = vmatpush1.msra.mxu0 0.0
        %972 = vmatprep.subr.mxu0 0.0
        %973 = vmatpush1.msra.mxu0 0.0
        %974 = vmatprep.subr.mxu0 0.0
        %975 = vmatpush1.msra.mxu0 0.0
        %976 = vmatprep.subr.mxu0 0.0
        %977 = vmatpush1.msra.mxu0 0.0
        %978 = vmatprep.subr.mxu0 0.0
        %979 = vmatpush1.msra.mxu0 0.0
        %980 = vmatprep.subr.mxu0 0.0
        %981 = vmatpush1.msra.mxu0 0.0
        %982 = vmatprep.subr.mxu0 0.0
        %983 = vmatpush1.msra.mxu0 0.0
        %984 = vmatprep.mubr.f32.mxu0 0.0
        %985 = vmatmul.mubr.f32.gmra.mrb[0].mxu0 %v847
        %v986 = vpop.f32.mrb[0].mxu0
        %v987 = vadd.f32 %v843, %v986
        %v988 = vpop.f32.mrb[0].mxu0
        %v989 = vadd.f32 %v843, %v988
        %990 = vdwg.mxu0
        %991 = vmatprep.subr.mxu0 %v736
        %992 = vmatpush1.msra.mxu0 %v735
        %993 = vmatprep.subr.mxu0 %v748
        %994 = vmatpush1.msra.mxu0 %v747
        %995 = vmatprep.subr.mxu0 %v760
        %996 = vmatpush1.msra.mxu0 %v759
        %997 = vmatprep.subr.mxu0 %v772
        %998 = vmatpush1.msra.mxu0 %v771
        %999 = vmatprep.subr.mxu0 %v784
        %1000 = vmatpush1.msra.mxu0 %v783
        %1001 = vmatprep.subr.mxu0 %v796
        %1002 = vmatpush1.msra.mxu0 %v795
        %1003 = vmatprep.subr.mxu0 %v808
        %1004 = vmatpush1.msra.mxu0 %v807
        %1005 = vmatprep.subr.mxu0 %v820
        %1006 = vmatpush1.msra.mxu0 %v819
        %1007 = vmatprep.subr.mxu0 %v832
        %1008 = vmatpush1.msra.mxu0 %v831
        %1009 = vmatprep.subr.mxu0 0.0
        %1010 = vmatpush1.msra.mxu0 0.0
        %1011 = vmatprep.subr.mxu0 0.0
        %1012 = vmatpush1.msra.mxu0 0.0
        %1013 = vmatprep.subr.mxu0 0.0
        %1014 = vmatpush1.msra.mxu0 0.0
        %1015 = vmatprep.subr.mxu0 0.0
        %1016 = vmatpush1.msra.mxu0 0.0
        %1017 = vmatprep.subr.mxu0 0.0
        %1018 = vmatpush1.msra.mxu0 0.0
        %1019 = vmatprep.subr.mxu0 0.0
        %1020 = vmatpush1.msra.mxu0 0.0
        %1021 = vmatprep.subr.mxu0 0.0
        %1022 = vmatpush1.msra.mxu0 0.0
        %1023 = vmatprep.subr.mxu0 0.0
        %1024 = vmatpush1.msra.mxu0 0.0
        %1025 = vmatprep.subr.mxu0 0.0
        %1026 = vmatpush1.msra.mxu0 0.0
        %1027 = vmatprep.subr.mxu0 0.0
        %1028 = vmatpush1.msra.mxu0 0.0
        %1029 = vmatprep.subr.mxu0 0.0
        %1030 = vmatpush1.msra.mxu0 0.0
        %1031 = vmatprep.subr.mxu0 0.0
        %1032 = vmatpush1.msra.mxu0 0.0
        %1033 = vmatprep.subr.mxu0 0.0
        %1034 = vmatpush1.msra.mxu0 0.0
        %1035 = vmatprep.subr.mxu0 0.0
        %1036 = vmatpush1.msra.mxu0 0.0
        %1037 = vmatprep.subr.mxu0 0.0
        %1038 = vmatpush1.msra.mxu0 0.0
        %1039 = vmatprep.subr.mxu0 0.0
        %1040 = vmatpush1.msra.mxu0 0.0
        %1041 = vmatprep.subr.mxu0 0.0
        %1042 = vmatpush1.msra.mxu0 0.0
        %1043 = vmatprep.subr.mxu0 0.0
        %1044 = vmatpush1.msra.mxu0 0.0
        %1045 = vmatprep.subr.mxu0 0.0
        %1046 = vmatpush1.msra.mxu0 0.0
        %1047 = vmatprep.subr.mxu0 0.0
        %1048 = vmatpush1.msra.mxu0 0.0
        %1049 = vmatprep.subr.mxu0 0.0
        %1050 = vmatpush1.msra.mxu0 0.0
        %1051 = vmatprep.subr.mxu0 0.0
        %1052 = vmatpush1.msra.mxu0 0.0
        %1053 = vmatprep.subr.mxu0 0.0
        %1054 = vmatpush1.msra.mxu0 0.0
        %1055 = vmatprep.mubr.f32.mxu0 0.0
        %1056 = vmatmul.mubr.f32.gmra.mrb[0].mxu0 %v847
        %v1057 = vpop.f32.mrb[0].mxu0
        %v1058 = vadd.f32 %v843, %v1057
        %v1059 = vpop.f32.mrb[0].mxu0
        %v1060 = vadd.f32 %v843, %v1059
        %1061 = vdwg.mxu0
        %1062 = vmatprep.subr.mxu0 %v738
        %1063 = vmatpush1.msra.mxu0 %v737
        %1064 = vmatprep.subr.mxu0 %v750
        %1065 = vmatpush1.msra.mxu0 %v749
        %1066 = vmatprep.subr.mxu0 %v762
        %1067 = vmatpush1.msra.mxu0 %v761
        %1068 = vmatprep.subr.mxu0 %v774
        %1069 = vmatpush1.msra.mxu0 %v773
        %1070 = vmatprep.subr.mxu0 %v786
        %1071 = vmatpush1.msra.mxu0 %v785
        %1072 = vmatprep.subr.mxu0 %v798
        %1073 = vmatpush1.msra.mxu0 %v797
        %1074 = vmatprep.subr.mxu0 %v810
        %1075 = vmatpush1.msra.mxu0 %v809
        %1076 = vmatprep.subr.mxu0 %v822
        %1077 = vmatpush1.msra.mxu0 %v821
        %1078 = vmatprep.subr.mxu0 %v834
        %1079 = vmatpush1.msra.mxu0 %v833
        %1080 = vmatprep.subr.mxu0 0.0
        %1081 = vmatpush1.msra.mxu0 0.0
        %1082 = vmatprep.subr.mxu0 0.0
        %1083 = vmatpush1.msra.mxu0 0.0
        %1084 = vmatprep.subr.mxu0 0.0
        %1085 = vmatpush1.msra.mxu0 0.0
        %1086 = vmatprep.subr.mxu0 0.0
        %1087 = vmatpush1.msra.mxu0 0.0
        %1088 = vmatprep.subr.mxu0 0.0
        %1089 = vmatpush1.msra.mxu0 0.0
        %1090 = vmatprep.subr.mxu0 0.0
        %1091 = vmatpush1.msra.mxu0 0.0
        %1092 = vmatprep.subr.mxu0 0.0
        %1093 = vmatpush1.msra.mxu0 0.0
        %1094 = vmatprep.subr.mxu0 0.0
        %1095 = vmatpush1.msra.mxu0 0.0
        %1096 = vmatprep.subr.mxu0 0.0
        %1097 = vmatpush1.msra.mxu0 0.0
        %1098 = vmatprep.subr.mxu0 0.0
        %1099 = vmatpush1.msra.mxu0 0.0
        %1100 = vmatprep.subr.mxu0 0.0
        %1101 = vmatpush1.msra.mxu0 0.0
        %1102 = vmatprep.subr.mxu0 0.0
        %1103 = vmatpush1.msra.mxu0 0.0
        %1104 = vmatprep.subr.mxu0 0.0
        %1105 = vmatpush1.msra.mxu0 0.0
        %1106 = vmatprep.subr.mxu0 0.0
        %1107 = vmatpush1.msra.mxu0 0.0
        %1108 = vmatprep.subr.mxu0 0.0
        %1109 = vmatpush1.msra.mxu0 0.0
        %1110 = vmatprep.subr.mxu0 0.0
        %1111 = vmatpush1.msra.mxu0 0.0
        %1112 = vmatprep.subr.mxu0 0.0
        %1113 = vmatpush1.msra.mxu0 0.0
        %1114 = vmatprep.subr.mxu0 0.0
        %1115 = vmatpush1.msra.mxu0 0.0
        %1116 = vmatprep.subr.mxu0 0.0
        %1117 = vmatpush1.msra.mxu0 0.0
        %1118 = vmatprep.subr.mxu0 0.0
        %1119 = vmatpush1.msra.mxu0 0.0
        %1120 = vmatprep.subr.mxu0 0.0
        %1121 = vmatpush1.msra.mxu0 0.0
        %1122 = vmatprep.subr.mxu0 0.0
        %1123 = vmatpush1.msra.mxu0 0.0
        %1124 = vmatprep.subr.mxu0 0.0
        %1125 = vmatpush1.msra.mxu0 0.0
        %1126 = vmatprep.mubr.f32.mxu0 0.0
        %1127 = vmatmul.mubr.f32.gmra.mrb[0].mxu0 %v847
        %v1128 = vpop.f32.mrb[0].mxu0
        %v1129 = vadd.f32 %v843, %v1128
        %v1130 = vpop.f32.mrb[0].mxu0
        %v1131 = vadd.f32 %v843, %v1130
        %1132 = vdwg.mxu0
        %1133 = vmatprep.subr.mxu0 %v740
        %1134 = vmatpush1.msra.mxu0 %v739
        %1135 = vmatprep.subr.mxu0 %v752
        %1136 = vmatpush1.msra.mxu0 %v751
        %1137 = vmatprep.subr.mxu0 %v764
        %1138 = vmatpush1.msra.mxu0 %v763
        %1139 = vmatprep.subr.mxu0 %v776
        %1140 = vmatpush1.msra.mxu0 %v775
        %1141 = vmatprep.subr.mxu0 %v788
        %1142 = vmatpush1.msra.mxu0 %v787
        %1143 = vmatprep.subr.mxu0 %v800
        %1144 = vmatpush1.msra.mxu0 %v799
        %1145 = vmatprep.subr.mxu0 %v812
        %1146 = vmatpush1.msra.mxu0 %v811
        %1147 = vmatprep.subr.mxu0 %v824
        %1148 = vmatpush1.msra.mxu0 %v823
        %1149 = vmatprep.subr.mxu0 %v836
        %1150 = vmatpush1.msra.mxu0 %v835
        %1151 = vmatprep.subr.mxu0 0.0
        %1152 = vmatpush1.msra.mxu0 0.0
        %1153 = vmatprep.subr.mxu0 0.0
        %1154 = vmatpush1.msra.mxu0 0.0
        %1155 = vmatprep.subr.mxu0 0.0
        %1156 = vmatpush1.msra.mxu0 0.0
        %1157 = vmatprep.subr.mxu0 0.0
        %1158 = vmatpush1.msra.mxu0 0.0
        %1159 = vmatprep.subr.mxu0 0.0
        %1160 = vmatpush1.msra.mxu0 0.0
        %1161 = vmatprep.subr.mxu0 0.0
        %1162 = vmatpush1.msra.mxu0 0.0
        %1163 = vmatprep.subr.mxu0 0.0
        %1164 = vmatpush1.msra.mxu0 0.0
        %1165 = vmatprep.subr.mxu0 0.0
        %1166 = vmatpush1.msra.mxu0 0.0
        %1167 = vmatprep.subr.mxu0 0.0
        %1168 = vmatpush1.msra.mxu0 0.0
        %1169 = vmatprep.subr.mxu0 0.0
        %1170 = vmatpush1.msra.mxu0 0.0
        %1171 = vmatprep.subr.mxu0 0.0
        %1172 = vmatpush1.msra.mxu0 0.0
        %1173 = vmatprep.subr.mxu0 0.0
        %1174 = vmatpush1.msra.mxu0 0.0
        %1175 = vmatprep.subr.mxu0 0.0
        %1176 = vmatpush1.msra.mxu0 0.0
        %1177 = vmatprep.subr.mxu0 0.0
        %1178 = vmatpush1.msra.mxu0 0.0
        %1179 = vmatprep.subr.mxu0 0.0
        %1180 = vmatpush1.msra.mxu0 0.0
        %1181 = vmatprep.subr.mxu0 0.0
        %1182 = vmatpush1.msra.mxu0 0.0
        %1183 = vmatprep.subr.mxu0 0.0
        %1184 = vmatpush1.msra.mxu0 0.0
        %1185 = vmatprep.subr.mxu0 0.0
        %1186 = vmatpush1.msra.mxu0 0.0
        %1187 = vmatprep.subr.mxu0 0.0
        %1188 = vmatpush1.msra.mxu0 0.0
        %1189 = vmatprep.subr.mxu0 0.0
        %1190 = vmatpush1.msra.mxu0 0.0
        %1191 = vmatprep.subr.mxu0 0.0
        %1192 = vmatpush1.msra.mxu0 0.0
        %1193 = vmatprep.subr.mxu0 0.0
        %1194 = vmatpush1.msra.mxu0 0.0
        %1195 = vmatprep.subr.mxu0 0.0
        %1196 = vmatpush1.msra.mxu0 0.0
        %1197 = vmatprep.mubr.f32.mxu0 0.0
        %1198 = vmatmul.mubr.f32.gmra.mrb[0].mxu0 %v847
        %v1199 = vpop.f32.mrb[0].mxu0
        %v1200 = vadd.f32 %v843, %v1199
        %v1201 = vpop.f32.mrb[0].mxu0
        %v1202 = vadd.f32 %v843, %v1201
        %1203 = vdwg.mxu0
        %1204 = vmatprep.subr.mxu0 %v742
        %1205 = vmatpush1.msra.mxu0 %v741
        %1206 = vmatprep.subr.mxu0 %v754
        %1207 = vmatpush1.msra.mxu0 %v753
        %1208 = vmatprep.subr.mxu0 %v766
        %1209 = vmatpush1.msra.mxu0 %v765
        %1210 = vmatprep.subr.mxu0 %v778
        %1211 = vmatpush1.msra.mxu0 %v777
        %1212 = vmatprep.subr.mxu0 %v790
        %1213 = vmatpush1.msra.mxu0 %v789
        %1214 = vmatprep.subr.mxu0 %v802
        %1215 = vmatpush1.msra.mxu0 %v801
        %1216 = vmatprep.subr.mxu0 %v814
        %1217 = vmatpush1.msra.mxu0 %v813
        %1218 = vmatprep.subr.mxu0 %v826
        %1219 = vmatpush1.msra.mxu0 %v825
        %1220 = vmatprep.subr.mxu0 %v838
        %1221 = vmatpush1.msra.mxu0 %v837
        %1222 = vmatprep.subr.mxu0 0.0
        %1223 = vmatpush1.msra.mxu0 0.0
        %1224 = vmatprep.subr.mxu0 0.0
        %1225 = vmatpush1.msra.mxu0 0.0
        %1226 = vmatprep.subr.mxu0 0.0
        %1227 = vmatpush1.msra.mxu0 0.0
        %1228 = vmatprep.subr.mxu0 0.0
        %1229 = vmatpush1.msra.mxu0 0.0
        %1230 = vmatprep.subr.mxu0 0.0
        %1231 = vmatpush1.msra.mxu0 0.0
        %1232 = vmatprep.subr.mxu0 0.0
        %1233 = vmatpush1.msra.mxu0 0.0
        %1234 = vmatprep.subr.mxu0 0.0
        %1235 = vmatpush1.msra.mxu0 0.0
        %1236 = vmatprep.subr.mxu0 0.0
        %1237 = vmatpush1.msra.mxu0 0.0
        %1238 = vmatprep.subr.mxu0 0.0
        %1239 = vmatpush1.msra.mxu0 0.0
        %1240 = vmatprep.subr.mxu0 0.0
        %1241 = vmatpush1.msra.mxu0 0.0
        %1242 = vmatprep.subr.mxu0 0.0
        %1243 = vmatpush1.msra.mxu0 0.0
        %1244 = vmatprep.subr.mxu0 0.0
        %1245 = vmatpush1.msra.mxu0 0.0
        %1246 = vmatprep.subr.mxu0 0.0
        %1247 = vmatpush1.msra.mxu0 0.0
        %1248 = vmatprep.subr.mxu0 0.0
        %1249 = vmatpush1.msra.mxu0 0.0
        %1250 = vmatprep.subr.mxu0 0.0
        %1251 = vmatpush1.msra.mxu0 0.0
        %1252 = vmatprep.subr.mxu0 0.0
        %1253 = vmatpush1.msra.mxu0 0.0
        %1254 = vmatprep.subr.mxu0 0.0
        %1255 = vmatpush1.msra.mxu0 0.0
        %1256 = vmatprep.subr.mxu0 0.0
        %1257 = vmatpush1.msra.mxu0 0.0
        %1258 = vmatprep.subr.mxu0 0.0
        %1259 = vmatpush1.msra.mxu0 0.0
        %1260 = vmatprep.subr.mxu0 0.0
        %1261 = vmatpush1.msra.mxu0 0.0
        %1262 = vmatprep.subr.mxu0 0.0
        %1263 = vmatpush1.msra.mxu0 0.0
        %1264 = vmatprep.subr.mxu0 0.0
        %1265 = vmatpush1.msra.mxu0 0.0
        %1266 = vmatprep.subr.mxu0 0.0
        %1267 = vmatpush1.msra.mxu0 0.0
        %1268 = vmatprep.mubr.f32.mxu0 0.0
        %1269 = vmatmul.mubr.f32.gmra.mrb[0].mxu0 %v847
        %v1270 = vpop.f32.mrb[0].mxu0
        %v1271 = vadd.f32 %v843, %v1270
        %v1272 = vpop.f32.mrb[0].mxu0
        %v1273 = vadd.f32 %v843, %v1272
        %1274 = vdwg.mxu0
        %v1275 = vxor.u32 %v916, 2147483648
        %v1276 = vxor.u32 %v918, 2147483648
        %v1277 = vxor.u32 %v987, 2147483648
        %v1278 = vxor.u32 %v989, 2147483648
        %v1279 = vxor.u32 %v1058, 2147483648
        %v1280 = vxor.u32 %v1060, 2147483648
        %v1281 = vxor.u32 %v1129, 2147483648
        %v1282 = vxor.u32 %v1131, 2147483648
        %v1283 = vxor.u32 %v1200, 2147483648
        %v1284 = vxor.u32 %v1202, 2147483648
        %v1285 = vxor.u32 %v1271, 2147483648
        %v1286 = vxor.u32 %v1273, 2147483648
        %v1287 = vmul.f32 %v1275, 1.442695
        %v1288 = vpow.pop %v1287
        %v1289 = vmul.f32 %v1276, 1.442695
        %v1290 = vpow.pop %v1289
        %v1291 = vmul.f32 %v1277, 1.442695
        %v1292 = vpow.pop %v1291
        %v1293 = vmul.f32 %v1278, 1.442695
        %v1294 = vpow.pop %v1293
        %v1295 = vmul.f32 %v1279, 1.442695
        %v1296 = vpow.pop %v1295
        %v1297 = vmul.f32 %v1280, 1.442695
        %v1298 = vpow.pop %v1297
        %v1299 = vmul.f32 %v1281, 1.442695
        %v1300 = vpow.pop %v1299
        %v1301 = vmul.f32 %v1282, 1.442695
        %v1302 = vpow.pop %v1301
        %v1303 = vmul.f32 %v1283, 1.442695
        %v1304 = vpow.pop %v1303
        %v1305 = vmul.f32 %v1284, 1.442695
        %v1306 = vpow.pop %v1305
        %v1307 = vmul.f32 %v1285, 1.442695
        %v1308 = vpow.pop %v1307
        %v1309 = vmul.f32 %v1286, 1.442695
        %v1310 = vpow.pop %v1309
        %v1311 = vadd.f32 %v1288, 1.0
        %v1312 = vadd.f32 %v1290, 1.0
        %v1313 = vadd.f32 %v1292, 1.0
        %v1314 = vadd.f32 %v1294, 1.0
        %v1315 = vadd.f32 %v1296, 1.0
        %v1316 = vadd.f32 %v1298, 1.0
        %v1317 = vadd.f32 %v1300, 1.0
        %v1318 = vadd.f32 %v1302, 1.0
        %v1319 = vadd.f32 %v1304, 1.0
        %v1320 = vadd.f32 %v1306, 1.0
        %v1321 = vadd.f32 %v1308, 1.0
        %v1322 = vadd.f32 %v1310, 1.0
        %v1323 = vrcp.pop %v1311
        %v1324 = vmul.f32 1.0, %v1323
        %v1325 = vrcp.pop %v1312
        %v1326 = vmul.f32 1.0, %v1325
        %v1327 = vrcp.pop %v1313
        %v1328 = vmul.f32 1.0, %v1327
        %v1329 = vrcp.pop %v1314
        %v1330 = vmul.f32 1.0, %v1329
        %v1331 = vrcp.pop %v1315
        %v1332 = vmul.f32 1.0, %v1331
        %v1333 = vrcp.pop %v1316
        %v1334 = vmul.f32 1.0, %v1333
        %v1335 = vrcp.pop %v1317
        %v1336 = vmul.f32 1.0, %v1335
        %v1337 = vrcp.pop %v1318
        %v1338 = vmul.f32 1.0, %v1337
        %v1339 = vrcp.pop %v1319
        %v1340 = vmul.f32 1.0, %v1339
        %v1341 = vrcp.pop %v1320
        %v1342 = vmul.f32 1.0, %v1341
        %v1343 = vrcp.pop %v1321
        %v1344 = vmul.f32 1.0, %v1343
        %v1345 = vrcp.pop %v1322
        %v1346 = vmul.f32 1.0, %v1345
        %v1347 = vmul.f32 %v1324, %v442
        %v1348 = vmul.f32 %v1326, %v443
        %v1349 = vmul.f32 %v1328, %v444
        %v1350 = vmul.f32 %v1330, %v445
        %v1351 = vmul.f32 %v1332, %v446
        %v1352 = vmul.f32 %v1334, %v447
        %v1353 = vmul.f32 %v1336, %v448
        %v1354 = vmul.f32 %v1338, %v449
        %v1355 = vmul.f32 %v1340, %v450
        %v1356 = vmul.f32 %v1342, %v451
        %v1357 = vmul.f32 %v1344, %v452
        %v1358 = vmul.f32 %v1346, %v453
        %v1359 = vadd.f32 %v1347, %v442
        %v1360 = vadd.f32 %v1348, %v443
        %v1361 = vadd.f32 %v1349, %v444
        %v1362 = vadd.f32 %v1350, %v445
        %v1363 = vadd.f32 %v1351, %v446
        %v1364 = vadd.f32 %v1352, %v447
        %v1365 = vadd.f32 %v1353, %v448
        %v1366 = vadd.f32 %v1354, %v449
        %v1367 = vadd.f32 %v1355, %v450
        %v1368 = vadd.f32 %v1356, %v451
        %v1369 = vadd.f32 %v1357, %v452
        %v1370 = vadd.f32 %v1358, %v453
        %1371 = vst [vmem:[%s186] sm:$0xff] %v1359
        %1372 = vst [vmem:[%s186 + $0x8] sm:$0xff] %v1360
        %1373 = vst [vmem:[%s186 + $0x10] sm:$0xff] %v1361
        %1374 = vst [vmem:[%s186 + $0x18] sm:$0xff] %v1362
        %1375 = vst [vmem:[%s186 + $0x20] sm:$0xff] %v1363
        %1376 = vst [vmem:[%s186 + $0x28] sm:$0xff] %v1364
        %1377 = vst [vmem:[%s186 + $0x30] sm:$0xff] %v1365
        %1378 = vst [vmem:[%s186 + $0x38] sm:$0xff] %v1366
        %1379 = vst [vmem:[%s186 + $0x40] sm:$0xff] %v1367
        %1380 = vst [vmem:[%s186 + $0x48] sm:$0xff] %v1368
        %1381 = vst [vmem:[%s186 + $0x50] sm:$0xff] %v1369
        %1382 = vst [vmem:[%s186 + $0x58] sm:$0xff] %v1370
        %s1383 = sand.u32 %s96, 1
        %s1384 = scalar_lea.sflag [#allocation5], %s1383
        %s1385 = sand.u32 %s96, 1
        %s1386 = smul.addr %s1385, 96
        %s1387 = scalar_lea.vmem [#allocation6], %s1386
        // Predicated region
        $region37: #{tpu_custom_call.1} parent=31 // pred_check
          %p1388 = pneg %p106
        $region38: #{tpu_custom_call.1} parent=31 // pred_check_branch
          %1390 = sbr.rel (%p1388) target = $region40
        $region39: #{tpu_custom_call.1} parent=31 // pred_region
          %s1391 = smul.u32 12, %s20
          %s1393 = ssub.s32 1536, 1536
          %1394 = vsyncadd %s1384, %s1393
          %s1395 = smul.addr %s1391, 128
          %s1396 = scalar_lea.hbm %s3, %s1395
          %s1398 = sshll.u32 %s1387, 4
          %s1399 = int_to_ptr.vmem [resolvable:$true] %s1398
          %1401 = dma.vmem_to_hbm [thread:$0]  %s1399, 1536, %s1396, %s1384
        $region40: #{tpu_custom_call.1} parent=31 // pred_fallthru
          _
      $region32: #{tpu_custom_call.1} parent=5 // pred_fallthru
        _
      %p1402 = scmp.le.s32.totalorder 2, %s15
      // Predicated region
      $region41: #{tpu_custom_call.1} parent=5 // pred_check
        %p1403 = pneg %p1402
      $region42: #{tpu_custom_call.1} parent=5 // pred_check_branch
        %1405 = sbr.rel (%p1403) target = $region44
      $region43: #{tpu_custom_call.1} parent=5 // pred_region
        %s1406 = ssub.s32 %s15, 2
        // Predicated region
        $region45: #{tpu_custom_call.1} parent=43 // pred_check
          %p1407 = pneg %p112
        $region46: #{tpu_custom_call.1} parent=43 // pred_check_branch
          %1409 = sbr.rel (%p1407) target = $region48
        $region47: #{tpu_custom_call.1} parent=43 // pred_region
          %s1410 = sand.u32 %s97, 1
          %s1411 = scalar_lea.sflag [#allocation5], %s1410
          %s1412 = sand.u32 %s97, 1
          %s1413 = smul.addr %s1412, 96
          %s1414 = scalar_lea.vmem [#allocation6], %s1413
          %1415 = dma.done %s1411, 1536
        $region48: #{tpu_custom_call.1} parent=43 // pred_fallthru
          _
      $region44: #{tpu_custom_call.1} parent=5 // pred_fallthru
        _
    $region6: #{tpu_custom_call.1} parent=1 // loop_footer
      %s19 = sadd.s32 1, %s15
    $region7: #{tpu_custom_call.1} parent=1 // loop_footer_branch
      %14 = sbr.rel target = $region3
    $region8: #{tpu_custom_call.1} parent=1 // loop_exit
      _
    %1416 = vsyncpa [#allocation4], 1
    %s1417 = scalar_lea.sflag [#allocation4], 1
    %1418 = vsyncpa %s1417, 1
    %1419 = vsyncpa [#allocation5], 1
    %s1420 = scalar_lea.sflag [#allocation5], 1
    %1421 = vsyncpa %s1420, 1

</llo_original>
